<compile_context>
chip_gen: v7x
topology: tpu7x:2x2x1
jax: 0.10.0
libtpu: 0.0.40
codegen_flags: <defaults>
</compile_context>

<pallas_src>
import math

import jax
import jax.numpy as jnp
from jax.experimental import pallas as pl
from jax.experimental.pallas import tpu as pltpu

# ---------------------------------------------------------------- config
BATCH = 2
NUM_MEL = 16          # conv1 input channels (mel bins)
T_IN = 16             # mel frames
D_MODEL = 32          # encoder hidden size == classifier input_size
N_LAYERS = 2
N_HEADS = 4
HEAD_DIM = D_MODEL // N_HEADS
FFN_DIM = 64
OUTPUT_DIMS = [24]    # classification hidden dims
OUTPUT_SIZE = 5
T_OUT = T_IN // 2     # after stride-2 conv2 (k=3, pad=1)
N_CLS = len(OUTPUT_DIMS) + 1
LN_EPS = 1e-5
LANES = 128           # lane width of the packed weight slab / output row


def _round8(n):
    return (n + 7) // 8 * 8


# ---------------------------------------------------------------- slab layout
def _build_layout():
    """Static (row_offset, shape) table for the single packed weight slab."""
    entries = [
        ("conv1_w", (3 * NUM_MEL, D_MODEL)),   # fused taps, k-major rows
        ("conv1_b", (1, D_MODEL)),
        ("conv2_w", (3 * D_MODEL, D_MODEL)),
        ("conv2_b", (1, D_MODEL)),
        ("pos", (T_OUT, D_MODEL)),
        ("bdmask", (D_MODEL, D_MODEL)),        # block-diag head mask (0/1)
    ]
    for li in range(N_LAYERS):
        entries += [
            (f"l{li}_ln1_g", (1, D_MODEL)), (f"l{li}_ln1_b", (1, D_MODEL)),
            (f"l{li}_wqkv", (D_MODEL, 3 * D_MODEL)),
            (f"l{li}_bqkv", (1, 3 * D_MODEL)),
            (f"l{li}_wo", (D_MODEL, D_MODEL)), (f"l{li}_bo", (1, D_MODEL)),
            (f"l{li}_ln2_g", (1, D_MODEL)), (f"l{li}_ln2_b", (1, D_MODEL)),
            (f"l{li}_w1", (D_MODEL, FFN_DIM)), (f"l{li}_b1", (1, FFN_DIM)),
            (f"l{li}_w2", (FFN_DIM, D_MODEL)), (f"l{li}_b2", (1, D_MODEL)),
        ]
    entries += [("lnf_g", (1, D_MODEL)), ("lnf_b", (1, D_MODEL))]
    dims = [D_MODEL] + OUTPUT_DIMS + [OUTPUT_SIZE]
    for i in range(N_CLS):
        cols = dims[i + 1] if i < N_CLS - 1 else LANES    # last layer lane-dense
        entries += [(f"cls_w{i}", (dims[i], cols)), (f"cls_b{i}", (1, cols))]

    layout, row = {}, 0
    for name, shape in entries:
        layout[name] = (row, shape)
        row += _round8(shape[0])
    return layout, row


_LAYOUT, _SLAB_ROWS = _build_layout()


# ---------------------------------------------------------------- helpers
def _gelu(y):
    # TODO(synk): torch/Whisper use exact erf-GELU; tanh approximation used
    # here for guaranteed Mosaic lowering (~1e-3 deviation).
    c = math.sqrt(2.0 / math.pi)
    return 0.5 * y * (1.0 + jnp.tanh(c * (y + 0.044715 * y * y * y)))


def _layernorm(x, g, b):
    mu = jnp.mean(x, axis=-1, keepdims=True)
    xc = x - mu
    var = jnp.mean(xc * xc, axis=-1, keepdims=True)
    return xc * jax.lax.rsqrt(var + LN_EPS) * g + b


# ---------------------------------------------------------------- fused kernel
def _fused_whisper_kernel(x_ref, w_ref, out_ref, h1p_ref):
    """One grid step == one batch element. All weights come from one slab."""
    f32 = jnp.float32
    T, S, D = T_IN, T_OUT, D_MODEL

    def t(name):                           # static slab slice -> VMEM value
        off, shape = _LAYOUT[name]
        return w_ref[off:off + shape[0], :shape[1]]

    bdmask = t("bdmask")                   # (D, D) 0/1 per-head block-diag mask

    # ---- conv1 (k=3, stride 1, pad 1): fused taps -> ONE (T,48)@(48,D) matmul
    xw = x_ref[0]                          # (T+2, NUM_MEL), time zero-padded
    x1 = jnp.concatenate([xw[0:T, :], xw[1:T + 1, :], xw[2:T + 2, :]], axis=1)
    h1 = _gelu(jnp.dot(x1, t("conv1_w"), preferred_element_type=f32)
               + t("conv1_b"))             # (T, D)

    # ---- conv2 (k=3, stride 2, pad 1): zero-padded scratch, strided even-row
    #      reads, fused taps -> ONE (S,96)@(96,D) matmul
    h1p_ref[0:1, :] = jnp.zeros((1, D), f32)          # top pad row
    h1p_ref[pl.ds(1, T), :] = h1                      # rows 1..T
    x2 = jnp.concatenate([h1p_ref[pl.ds(0, S, stride=2), :],
                          h1p_ref[pl.ds(1, S, stride=2), :],
                          h1p_ref[pl.ds(2, S, stride=2), :]], axis=1)   # (S, 3D)
    h = _gelu(jnp.dot(x2, t("conv2_w"), preferred_element_type=f32)
              + t("conv2_b")) + t("pos")              # (S, D) + pos embed

    # ---- pre-LN encoder layers (unrolled); heads batched via block-diag ops
    for li in range(N_LAYERS):
        # -- self attention (q scale & biases pre-folded into wqkv/bqkv)
        residual = h
        hn = _layernorm(h, t(f"l{li}_ln1_g"), t(f"l{li}_ln1_b"))
        qkv = jnp.dot(hn, t(f"l{li}_wqkv"), preferred_element_type=f32) \
            + t(f"l{li}_bqkv")                        # (S, 3D)
        q, kx, v = qkv[:, 0:D], qkv[:, D:2 * D], qkv[:, 2 * D:3 * D]

        kt_bd = jnp.tile(kx.T, (1, N_HEADS)) * bdmask        # (D, D) blk-diag K^T
        s = jnp.dot(q, kt_bd, preferred_element_type=f32)    # (S, D): head h -> lanes h*HD..
        # Row-global max is a valid softmax shift (exact per-head softmax since
        # the shift cancels); it avoids a per-segment max reduction.
        m = jnp.max(s, axis=-1, keepdims=True)
        e = jnp.exp(s - m)
        denom = jnp.dot(e, bdmask, preferred_element_type=f32)  # per-head sums
        p = e * pl.reciprocal(denom, approx=True)
        v_bd = jnp.tile(v, (N_HEADS, 1)) * bdmask             # (D, D) blk-diag V
        ao = jnp.dot(p, v_bd, preferred_element_type=f32)     # (S, D), heads merged
        h = residual + jnp.dot(ao, t(f"l{li}_wo"),
                               preferred_element_type=f32) + t(f"l{li}_bo")

        # -- feed forward
        residual = h
        hn = _layernorm(h, t(f"l{li}_ln2_g"), t(f"l{li}_ln2_b"))
        ff = _gelu(jnp.dot(hn, t(f"l{li}_w1"), preferred_element_type=f32)
                   + t(f"l{li}_b1"))
        h = residual + jnp.dot(ff, t(f"l{li}_w2"),
                               preferred_element_type=f32) + t(f"l{li}_b2")

    # ---- final LN, mean pooling (strategy='mean'), classifier MLP
    h = _layernorm(h, t("lnf_g"), t("lnf_b"))
    z = jnp.mean(h, axis=0, keepdims=True)                    # (1, D)
    for i in range(N_CLS):
        z = jnp.dot(z, t(f"cls_w{i}"), preferred_element_type=f32) + t(f"cls_b{i}")
        if i < N_CLS - 1:
            z = jnp.maximum(z, 0.0)       # ReLU (+Dropout = identity in eval)
    out_ref[0] = z                        # (1, 128) lane-dense row


# ---------------------------------------------------------------- weight packing
def pack_params(params):
    """One-time prep: fold scale/biases, fuse taps/QKV, pack into one slab."""
    f32 = jnp.float32
    scale = 1.0 / math.sqrt(HEAD_DIM)
    as2d = lambda v: jnp.asarray(v, f32).reshape(1, -1)

    vals = {}
    vals["conv1_w"] = jnp.asarray(params["conv1_w"], f32).transpose(2, 1, 0) \
                         .reshape(3 * NUM_MEL, D_MODEL)       # rows: k-major, ci minor
    vals["conv1_b"] = as2d(params["conv1_b"])
    vals["conv2_w"] = jnp.asarray(params["conv2_w"], f32).transpose(2, 1, 0) \
                         .reshape(3 * D_MODEL, D_MODEL)
    vals["conv2_b"] = as2d(params["conv2_b"])
    vals["pos"] = jnp.asarray(params["pos"], f32)
    blk = jnp.arange(D_MODEL) // HEAD_DIM
    vals["bdmask"] = (blk[:, None] == blk[None, :]).astype(f32)

    for li, lp in enumerate(params["layers"]):
        vals[f"l{li}_ln1_g"] = as2d(lp["ln1_g"])
        vals[f"l{li}_ln1_b"] = as2d(lp["ln1_b"])
        vals[f"l{li}_wqkv"] = jnp.concatenate(
            [jnp.asarray(lp["wq"], f32) * scale,     # fold 1/sqrt(head_dim)
             jnp.asarray(lp["wk"], f32),
             jnp.asarray(lp["wv"], f32)], axis=1)
        vals[f"l{li}_bqkv"] = jnp.concatenate(
            [jnp.asarray(lp["bq"], f32) * scale,
             jnp.zeros((D_MODEL,), f32),             # k_proj has no bias
             jnp.asarray(lp["bv"], f32)]).reshape(1, -1)
        vals[f"l{li}_wo"] = jnp.asarray(lp["wo"], f32)
        vals[f"l{li}_bo"] = as2d(lp["bo"])
        vals[f"l{li}_ln2_g"] = as2d(lp["ln2_g"])
        vals[f"l{li}_ln2_b"] = as2d(lp["ln2_b"])
        vals[f"l{li}_w1"] = jnp.asarray(lp["w1"], f32)
        vals[f"l{li}_b1"] = as2d(lp["b1"])
        vals[f"l{li}_w2"] = jnp.asarray(lp["w2"], f32)
        vals[f"l{li}_b2"] = as2d(lp["b2"])

    vals["lnf_g"] = as2d(params["lnf_g"])
    vals["lnf_b"] = as2d(params["lnf_b"])
    for i, (w_, b_) in enumerate(zip(params["cls_w"], params["cls_b"])):
        w_ = jnp.asarray(w_, f32)
        b_ = as2d(b_)
        if i == N_CLS - 1:                           # lane-dense final layer
            w_ = jnp.pad(w_, ((0, 0), (0, LANES - w_.shape[1])))
            b_ = jnp.pad(b_, ((0, 0), (0, LANES - b_.shape[1])))
        vals[f"cls_w{i}"] = w_
        vals[f"cls_b{i}"] = b_

    slab = jnp.zeros((_SLAB_ROWS, LANES), f32)
    for name, (off, shape) in _LAYOUT.items():
        v = vals[name]
        assert v.shape == shape, (name, v.shape, shape)
        slab = slab.at[off:off + shape[0], :shape[1]].set(v)
    return slab


# ---------------------------------------------------------------- wrapper
def whisper_classifier_forward(slab, x):
    """x: (B, NUM_MEL, T_IN) mel features (torch NCW) -> logits (B, OUTPUT_SIZE)."""
    B, c_in, t_in = x.shape
    # One-time layout plumbing: NCW -> (B, T, C), zero-pad time by 1 each side.
    xp = jnp.pad(x.transpose(0, 2, 1).astype(jnp.float32), ((0, 0), (1, 1), (0, 0)))

    out = pl.pallas_call(
        _fused_whisper_kernel,
        out_shape=jax.ShapeDtypeStruct((B, 1, LANES), jnp.float32),
        grid=(B,),
        in_specs=[
            pl.BlockSpec((1, t_in + 2, c_in), lambda b: (b, 0, 0)),
            pl.BlockSpec((_SLAB_ROWS, LANES), lambda b: (0, 0)),   # one weight slab
        ],
        out_specs=pl.BlockSpec((1, 1, LANES), lambda b: (b, 0, 0)),
        scratch_shapes=[pltpu.VMEM((_round8(T_IN + 1), D_MODEL), jnp.float32)],
        compiler_params=pltpu.CompilerParams(
            dimension_semantics=("parallel",)),      # v7x: one sample per TC
    )(xp, slab)
    return out[:, 0, :OUTPUT_SIZE]


# ---------------------------------------------------------------- deterministic params
def init_params(key):
    keys = iter(jax.random.split(key, 64))

    def nrm(shape, scale=0.02):
        return scale * jax.random.normal(next(keys), shape, dtype=jnp.float32)

    p = {
        "conv1_w": nrm((D_MODEL, NUM_MEL, 3)),   # torch Conv1d layout (Cout, Cin, K)
        "conv1_b": nrm((D_MODEL,)),
        "conv2_w": nrm((D_MODEL, D_MODEL, 3)),
        "conv2_b": nrm((D_MODEL,)),
        "pos": nrm((T_OUT, D_MODEL)),
        "layers": [],
        "lnf_g": jnp.ones((D_MODEL,), jnp.float32),
        "lnf_b": jnp.zeros((D_MODEL,), jnp.float32),
    }
    for _ in range(N_LAYERS):
        p["layers"].append({
            "ln1_g": jnp.ones((D_MODEL,), jnp.float32),
            "ln1_b": jnp.zeros((D_MODEL,), jnp.float32),
            "wq": nrm((D_MODEL, D_MODEL)), "bq": nrm((D_MODEL,)),
            "wk": nrm((D_MODEL, D_MODEL)),                     # k_proj has no bias
            "wv": nrm((D_MODEL, D_MODEL)), "bv": nrm((D_MODEL,)),
            "wo": nrm((D_MODEL, D_MODEL)), "bo": nrm((D_MODEL,)),
            "ln2_g": jnp.ones((D_MODEL,), jnp.float32),
            "ln2_b": jnp.zeros((D_MODEL,), jnp.float32),
            "w1": nrm((D_MODEL, FFN_DIM)), "b1": nrm((FFN_DIM,)),
            "w2": nrm((FFN_DIM, D_MODEL)), "b2": nrm((D_MODEL,)),
        })
    dims = [D_MODEL] + OUTPUT_DIMS + [OUTPUT_SIZE]
    p["cls_w"] = [nrm((dims[i], dims[i + 1])) for i in range(len(dims) - 1)]
    p["cls_b"] = [nrm((dims[i + 1],)) for i in range(len(dims) - 1)]
    return p


# ---------------------------------------------------------------- main
if __name__ == "__main__":
    key = jax.random.PRNGKey(0)
    pkey, xkey = jax.random.split(key)
    params = init_params(pkey)
    x = jax.random.normal(xkey, (BATCH, NUM_MEL, T_IN), dtype=jnp.float32)

    slab = jax.block_until_ready(pack_params(params))   # one-time weight packing
    fwd = jax.jit(whisper_classifier_forward)
    logits = jax.block_until_ready(fwd(slab, x))
    assert logits.shape == (BATCH, OUTPUT_SIZE), logits.shape
    assert bool(jnp.all(jnp.isfinite(logits)))
    print("KERNEL_OK")
</pallas_src>

<mosaic_0001>
module attributes {stable_mosaic.version = 11 : i64} {
  func.func @_fused_whisper_kernel(%arg0: i32, %arg1: memref<1x18x16xf32, #tpu.memory_space<vmem>>, %arg2: memref<736x128xf32, #tpu.memory_space<vmem>>, %arg3: memref<1x1x128xf32, #tpu.memory_space<vmem>>, %arg4: memref<24x32xf32, #tpu.memory_space<vmem>>) attributes {dimension_semantics = [#tpu.dimension_semantics<parallel>], iteration_bounds = array<i64: 2>, scalar_prefetch = 0 : i64, scratch_operands = 1 : i64, tpu.core_type = #tpu.core_type<tc>, window_params = [{transform_indices = @transform_0, window_bounds = array<i64: 1, 18, 16>}, {pipeline_mode = #tpu.pipeline_mode<synchronous>, transform_indices = @transform_1, window_bounds = array<i64: 736, 128>}, {transform_indices = @transform_2, window_bounds = array<i64: 1, 1, 128>}]} {
    %c168 = arith.constant 168 : index
    %c0 = arith.constant 0 : index
    %0 = vector.load %arg2[%c168, %c0] : memref<736x128xf32, #tpu.memory_space<vmem>>, vector<32x32xf32>
    %c0_0 = arith.constant 0 : index
    %c0_1 = arith.constant 0 : index
    %c0_2 = arith.constant 0 : index
    %1 = vector.load %arg1[%c0_0, %c0_1, %c0_2] : memref<1x18x16xf32, #tpu.memory_space<vmem>>, vector<1x18x16xf32>
    %2 = vector.shape_cast %1 : vector<1x18x16xf32> to vector<18x16xf32>
    %3 = vector.extract_strided_slice %2 {offsets = [0, 0], sizes = [16, 16], strides = [1, 1]} : vector<18x16xf32> to vector<16x16xf32>
    %4 = vector.extract_strided_slice %2 {offsets = [1, 0], sizes = [16, 16], strides = [1, 1]} : vector<18x16xf32> to vector<16x16xf32>
    %5 = vector.extract_strided_slice %2 {offsets = [2, 0], sizes = [16, 16], strides = [1, 1]} : vector<18x16xf32> to vector<16x16xf32>
    %6 = tpu.concatenate %3, %4, %5 in 1 : vector<16x16xf32>, vector<16x16xf32>, vector<16x16xf32> -> vector<16x48xf32>
    %c0_3 = arith.constant 0 : index
    %c0_4 = arith.constant 0 : index
    %7 = vector.load %arg2[%c0_3, %c0_4] : memref<736x128xf32, #tpu.memory_space<vmem>>, vector<48x32xf32>
    %cst = arith.constant dense<0.000000e+00> : vector<16x32xf32>
    %8 = tpu.matmul %6, %7, %cst {dimension_numbers = #tpu.dot_dimension_numbers<[1], [0], [0], [1], [0, 0, 1, 1], [], []>} : vector<16x48xf32>, vector<48x32xf32>, vector<16x32xf32> -> vector<16x32xf32>
    %c48 = arith.constant 48 : index
    %c0_5 = arith.constant 0 : index
    %9 = vector.load %arg2[%c48, %c0_5] : memref<736x128xf32, #tpu.memory_space<vmem>>, vector<1x32xf32>
    %10 = vector.broadcast %9 : vector<1x32xf32> to vector<16x32xf32>
    %11 = arith.addf %8, %10 : vector<16x32xf32>
    %cst_6 = arith.constant 5.000000e-01 : f32
    %12 = vector.broadcast %cst_6 : f32 to vector<16x32xf32>
    %13 = arith.mulf %12, %11 : vector<16x32xf32>
    %cst_7 = arith.constant 4.471500e-02 : f32
    %14 = vector.broadcast %cst_7 : f32 to vector<16x32xf32>
    %15 = arith.mulf %14, %11 : vector<16x32xf32>
    %16 = arith.mulf %15, %11 : vector<16x32xf32>
    %17 = arith.mulf %16, %11 : vector<16x32xf32>
    %18 = arith.addf %11, %17 : vector<16x32xf32>
    %cst_8 = arith.constant 0.797884583 : f32
    %19 = vector.broadcast %cst_8 : f32 to vector<16x32xf32>
    %20 = arith.mulf %19, %18 : vector<16x32xf32>
    %21 = math.tanh %20 : vector<16x32xf32>
    %cst_9 = arith.constant 1.000000e+00 : f32
    %22 = vector.broadcast %cst_9 : f32 to vector<16x32xf32>
    %23 = arith.addf %22, %21 : vector<16x32xf32>
    %24 = arith.mulf %13, %23 : vector<16x32xf32>
    %cst_10 = arith.constant 0.000000e+00 : f32
    %25 = vector.broadcast %cst_10 : f32 to vector<1x32xf32>
    %c0_11 = arith.constant 0 : index
    %c0_12 = arith.constant 0 : index
    %26 = vector.load %arg4[%c0_11, %c0_12] : memref<24x32xf32, #tpu.memory_space<vmem>>, vector<1x32xf32>
    tpu.vector_store %arg4[%c0_11, %c0_12], %25 {strides = array<i32>} : memref<24x32xf32, #tpu.memory_space<vmem>>, vector<1x32xf32>,
    %c1 = arith.constant 1 : index
    %c0_13 = arith.constant 0 : index
    %27 = vector.load %arg4[%c1, %c0_13] : memref<24x32xf32, #tpu.memory_space<vmem>>, vector<16x32xf32>
    tpu.vector_store %arg4[%c1, %c0_13], %24 {strides = array<i32>} : memref<24x32xf32, #tpu.memory_space<vmem>>, vector<16x32xf32>,
    %c0_14 = arith.constant 0 : index
    %c0_15 = arith.constant 0 : index
    %28 = tpu.strided_load %arg4[%c0_14, %c0_15] {strides = array<i32: 2, 1>} : memref<24x32xf32, #tpu.memory_space<vmem>>, vector<8x32xf32>
    %c1_16 = arith.constant 1 : index
    %c0_17 = arith.constant 0 : index
    %29 = tpu.strided_load %arg4[%c1_16, %c0_17] {strides = array<i32: 2, 1>} : memref<24x32xf32, #tpu.memory_space<vmem>>, vector<8x32xf32>
    %c2 = arith.constant 2 : index
    %c0_18 = arith.constant 0 : index
    %30 = tpu.strided_load %arg4[%c2, %c0_18] {strides = array<i32: 2, 1>} : memref<24x32xf32, #tpu.memory_space<vmem>>, vector<8x32xf32>
    %31 = tpu.concatenate %28, %29, %30 in 1 : vector<8x32xf32>, vector<8x32xf32>, vector<8x32xf32> -> vector<8x96xf32>
    %c56 = arith.constant 56 : index
    %c0_19 = arith.constant 0 : index
    %32 = vector.load %arg2[%c56, %c0_19] : memref<736x128xf32, #tpu.memory_space<vmem>>, vector<96x32xf32>
    %cst_20 = arith.constant dense<0.000000e+00> : vector<8x32xf32>
    %33 = tpu.matmul %31, %32, %cst_20 {dimension_numbers = #tpu.dot_dimension_numbers<[1], [0], [0], [1], [0, 0, 1, 1], [], []>} : vector<8x96xf32>, vector<96x32xf32>, vector<8x32xf32> -> vector<8x32xf32>
    %c152 = arith.constant 152 : index
    %c0_21 = arith.constant 0 : index
    %34 = vector.load %arg2[%c152, %c0_21] : memref<736x128xf32, #tpu.memory_space<vmem>>, vector<1x32xf32>
    %35 = vector.broadcast %34 : vector<1x32xf32> to vector<8x32xf32>
    %36 = arith.addf %33, %35 : vector<8x32xf32>
    %cst_22 = arith.constant 5.000000e-01 : f32
    %37 = vector.broadcast %cst_22 : f32 to vector<8x32xf32>
    %38 = arith.mulf %37, %36 : vector<8x32xf32>
    %cst_23 = arith.constant 4.471500e-02 : f32
    %39 = vector.broadcast %cst_23 : f32 to vector<8x32xf32>
    %40 = arith.mulf %39, %36 : vector<8x32xf32>
    %41 = arith.mulf %40, %36 : vector<8x32xf32>
    %42 = arith.mulf %41, %36 : vector<8x32xf32>
    %43 = arith.addf %36, %42 : vector<8x32xf32>
    %cst_24 = arith.constant 0.797884583 : f32
    %44 = vector.broadcast %cst_24 : f32 to vector<8x32xf32>
    %45 = arith.mulf %44, %43 : vector<8x32xf32>
    %46 = math.tanh %45 : vector<8x32xf32>
    %cst_25 = arith.constant 1.000000e+00 : f32
    %47 = vector.broadcast %cst_25 : f32 to vector<8x32xf32>
    %48 = arith.addf %47, %46 : vector<8x32xf32>
    %49 = arith.mulf %38, %48 : vector<8x32xf32>
    %c160 = arith.constant 160 : index
    %c0_26 = arith.constant 0 : index
    %50 = vector.load %arg2[%c160, %c0_26] : memref<736x128xf32, #tpu.memory_space<vmem>>, vector<8x32xf32>
    %51 = arith.addf %49, %50 : vector<8x32xf32>
    %c200 = arith.constant 200 : index
    %c0_27 = arith.constant 0 : index
    %52 = vector.load %arg2[%c200, %c0_27] : memref<736x128xf32, #tpu.memory_space<vmem>>, vector<1x32xf32>
    %c208 = arith.constant 208 : index
    %c0_28 = arith.constant 0 : index
    %53 = vector.load %arg2[%c208, %c0_28] : memref<736x128xf32, #tpu.memory_space<vmem>>, vector<1x32xf32>
    %cst_29 = arith.constant dense<0.000000e+00> : vector<8xf32>
    %54 = vector.multi_reduction <add>, %51, %cst_29 [1] : vector<8x32xf32> to vector<8xf32>
    %55 = vector.shape_cast %54 : vector<8xf32> to vector<8x1xf32>
    %cst_30 = arith.constant 3.200000e+01 : f32
    %56 = vector.broadcast %cst_30 : f32 to vector<8x1xf32>
    %57 = arith.divf %55, %56 : vector<8x1xf32>
    %58 = vector.broadcast %57 : vector<8x1xf32> to vector<8x32xf32>
    %59 = arith.subf %51, %58 : vector<8x32xf32>
    %60 = arith.mulf %59, %59 : vector<8x32xf32>
    %cst_31 = arith.constant dense<0.000000e+00> : vector<8xf32>
    %61 = vector.multi_reduction <add>, %60, %cst_31 [1] : vector<8x32xf32> to vector<8xf32>
    %62 = vector.shape_cast %61 : vector<8xf32> to vector<8x1xf32>
    %cst_32 = arith.constant 3.200000e+01 : f32
    %63 = vector.broadcast %cst_32 : f32 to vector<8x1xf32>
    %64 = arith.divf %62, %63 : vector<8x1xf32>
    %cst_33 = arith.constant 9.99999974E-6 : f32
    %65 = vector.broadcast %cst_33 : f32 to vector<8x1xf32>
    %66 = arith.addf %64, %65 : vector<8x1xf32>
    %67 = math.rsqrt %66 : vector<8x1xf32>
    %68 = vector.broadcast %67 : vector<8x1xf32> to vector<8x32xf32>
    %69 = arith.mulf %59, %68 : vector<8x32xf32>
    %70 = vector.broadcast %52 : vector<1x32xf32> to vector<8x32xf32>
    %71 = arith.mulf %69, %70 : vector<8x32xf32>
    %72 = vector.broadcast %53 : vector<1x32xf32> to vector<8x32xf32>
    %73 = arith.addf %71, %72 : vector<8x32xf32>
    %c216 = arith.constant 216 : index
    %c0_34 = arith.constant 0 : index
    %74 = vector.load %arg2[%c216, %c0_34] : memref<736x128xf32, #tpu.memory_space<vmem>>, vector<32x96xf32>
    %cst_35 = arith.constant dense<0.000000e+00> : vector<8x96xf32>
    %75 = tpu.matmul %73, %74, %cst_35 {dimension_numbers = #tpu.dot_dimension_numbers<[1], [0], [0], [1], [0, 0, 1, 1], [], []>} : vector<8x32xf32>, vector<32x96xf32>, vector<8x96xf32> -> vector<8x96xf32>
    %c248 = arith.constant 248 : index
    %c0_36 = arith.constant 0 : index
    %76 = vector.load %arg2[%c248, %c0_36] : memref<736x128xf32, #tpu.memory_space<vmem>>, vector<1x96xf32>
    %77 = vector.broadcast %76 : vector<1x96xf32> to vector<8x96xf32>
    %78 = arith.addf %75, %77 : vector<8x96xf32>
    %79 = vector.extract_strided_slice %78 {offsets = [0, 0], sizes = [8, 32], strides = [1, 1]} : vector<8x96xf32> to vector<8x32xf32>
    %80 = vector.extract_strided_slice %78 {offsets = [0, 32], sizes = [8, 32], strides = [1, 1]} : vector<8x96xf32> to vector<8x32xf32>
    %81 = vector.extract_strided_slice %78 {offsets = [0, 64], sizes = [8, 32], strides = [1, 1]} : vector<8x96xf32> to vector<8x32xf32>
    %82 = tpu.transpose %80, [1, 0] : vector<8x32xf32> -> vector<32x8xf32>
    %83 = tpu.concatenate %82, %82, %82, %82 in 1 : vector<32x8xf32>, vector<32x8xf32>, vector<32x8xf32>, vector<32x8xf32> -> vector<32x32xf32>
    %84 = arith.mulf %83, %0 : vector<32x32xf32>
    %cst_37 = arith.constant dense<0.000000e+00> : vector<8x32xf32>
    %85 = tpu.matmul %79, %84, %cst_37 {dimension_numbers = #tpu.dot_dimension_numbers<[1], [0], [0], [1], [0, 0, 1, 1], [], []>} : vector<8x32xf32>, vector<32x32xf32>, vector<8x32xf32> -> vector<8x32xf32>
    %cst_38 = arith.constant dense<0xFF800000> : vector<8xf32>
    %86 = vector.multi_reduction <maximumf>, %85, %cst_38 [1] : vector<8x32xf32> to vector<8xf32>
    %87 = vector.shape_cast %86 : vector<8xf32> to vector<8x1xf32>
    %88 = vector.broadcast %87 : vector<8x1xf32> to vector<8x32xf32>
    %89 = arith.subf %85, %88 : vector<8x32xf32>
    %90 = math.exp %89 : vector<8x32xf32>
    %cst_39 = arith.constant dense<0.000000e+00> : vector<8x32xf32>
    %91 = tpu.matmul %90, %0, %cst_39 {dimension_numbers = #tpu.dot_dimension_numbers<[1], [0], [0], [1], [0, 0, 1, 1], [], []>} : vector<8x32xf32>, vector<32x32xf32>, vector<8x32xf32> -> vector<8x32xf32>
    %92 = tpu.reciprocal %91 {approx = true} : vector<8x32xf32> -> vector<8x32xf32>
    %93 = arith.mulf %90, %92 : vector<8x32xf32>
    %94 = tpu.concatenate %81, %81, %81, %81 in 0 : vector<8x32xf32>, vector<8x32xf32>, vector<8x32xf32>, vector<8x32xf32> -> vector<32x32xf32>
    %95 = arith.mulf %94, %0 : vector<32x32xf32>
    %cst_40 = arith.constant dense<0.000000e+00> : vector<8x32xf32>
    %96 = tpu.matmul %93, %95, %cst_40 {dimension_numbers = #tpu.dot_dimension_numbers<[1], [0], [0], [1], [0, 0, 1, 1], [], []>} : vector<8x32xf32>, vector<32x32xf32>, vector<8x32xf32> -> vector<8x32xf32>
    %c256 = arith.constant 256 : index
    %c0_41 = arith.constant 0 : index
    %97 = vector.load %arg2[%c256, %c0_41] : memref<736x128xf32, #tpu.memory_space<vmem>>, vector<32x32xf32>
    %cst_42 = arith.constant dense<0.000000e+00> : vector<8x32xf32>
    %98 = tpu.matmul %96, %97, %cst_42 {dimension_numbers = #tpu.dot_dimension_numbers<[1], [0], [0], [1], [0, 0, 1, 1], [], []>} : vector<8x32xf32>, vector<32x32xf32>, vector<8x32xf32> -> vector<8x32xf32>
    %99 = arith.addf %51, %98 : vector<8x32xf32>
    %c288 = arith.constant 288 : index
    %c0_43 = arith.constant 0 : index
    %100 = vector.load %arg2[%c288, %c0_43] : memref<736x128xf32, #tpu.memory_space<vmem>>, vector<1x32xf32>
    %101 = vector.broadcast %100 : vector<1x32xf32> to vector<8x32xf32>
    %102 = arith.addf %99, %101 : vector<8x32xf32>
    %c296 = arith.constant 296 : index
    %c0_44 = arith.constant 0 : index
    %103 = vector.load %arg2[%c296, %c0_44] : memref<736x128xf32, #tpu.memory_space<vmem>>, vector<1x32xf32>
    %c304 = arith.constant 304 : index
    %c0_45 = arith.constant 0 : index
    %104 = vector.load %arg2[%c304, %c0_45] : memref<736x128xf32, #tpu.memory_space<vmem>>, vector<1x32xf32>
    %cst_46 = arith.constant dense<0.000000e+00> : vector<8xf32>
    %105 = vector.multi_reduction <add>, %102, %cst_46 [1] : vector<8x32xf32> to vector<8xf32>
    %106 = vector.shape_cast %105 : vector<8xf32> to vector<8x1xf32>
    %cst_47 = arith.constant 3.200000e+01 : f32
    %107 = vector.broadcast %cst_47 : f32 to vector<8x1xf32>
    %108 = arith.divf %106, %107 : vector<8x1xf32>
    %109 = vector.broadcast %108 : vector<8x1xf32> to vector<8x32xf32>
    %110 = arith.subf %102, %109 : vector<8x32xf32>
    %111 = arith.mulf %110, %110 : vector<8x32xf32>
    %cst_48 = arith.constant dense<0.000000e+00> : vector<8xf32>
    %112 = vector.multi_reduction <add>, %111, %cst_48 [1] : vector<8x32xf32> to vector<8xf32>
    %113 = vector.shape_cast %112 : vector<8xf32> to vector<8x1xf32>
    %cst_49 = arith.constant 3.200000e+01 : f32
    %114 = vector.broadcast %cst_49 : f32 to vector<8x1xf32>
    %115 = arith.divf %113, %114 : vector<8x1xf32>
    %cst_50 = arith.constant 9.99999974E-6 : f32
    %116 = vector.broadcast %cst_50 : f32 to vector<8x1xf32>
    %117 = arith.addf %115, %116 : vector<8x1xf32>
    %118 = math.rsqrt %117 : vector<8x1xf32>
    %119 = vector.broadcast %118 : vector<8x1xf32> to vector<8x32xf32>
    %120 = arith.mulf %110, %119 : vector<8x32xf32>
    %121 = vector.broadcast %103 : vector<1x32xf32> to vector<8x32xf32>
    %122 = arith.mulf %120, %121 : vector<8x32xf32>
    %123 = vector.broadcast %104 : vector<1x32xf32> to vector<8x32xf32>
    %124 = arith.addf %122, %123 : vector<8x32xf32>
    %c312 = arith.constant 312 : index
    %c0_51 = arith.constant 0 : index
    %125 = vector.load %arg2[%c312, %c0_51] : memref<736x128xf32, #tpu.memory_space<vmem>>, vector<32x64xf32>
    %cst_52 = arith.constant dense<0.000000e+00> : vector<8x64xf32>
    %126 = tpu.matmul %124, %125, %cst_52 {dimension_numbers = #tpu.dot_dimension_numbers<[1], [0], [0], [1], [0, 0, 1, 1], [], []>} : vector<8x32xf32>, vector<32x64xf32>, vector<8x64xf32> -> vector<8x64xf32>
    %c344 = arith.constant 344 : index
    %c0_53 = arith.constant 0 : index
    %127 = vector.load %arg2[%c344, %c0_53] : memref<736x128xf32, #tpu.memory_space<vmem>>, vector<1x64xf32>
    %128 = vector.broadcast %127 : vector<1x64xf32> to vector<8x64xf32>
    %129 = arith.addf %126, %128 : vector<8x64xf32>
    %cst_54 = arith.constant 5.000000e-01 : f32
    %130 = vector.broadcast %cst_54 : f32 to vector<8x64xf32>
    %131 = arith.mulf %130, %129 : vector<8x64xf32>
    %cst_55 = arith.constant 4.471500e-02 : f32
    %132 = vector.broadcast %cst_55 : f32 to vector<8x64xf32>
    %133 = arith.mulf %132, %129 : vector<8x64xf32>
    %134 = arith.mulf %133, %129 : vector<8x64xf32>
    %135 = arith.mulf %134, %129 : vector<8x64xf32>
    %136 = arith.addf %129, %135 : vector<8x64xf32>
    %cst_56 = arith.constant 0.797884583 : f32
    %137 = vector.broadcast %cst_56 : f32 to vector<8x64xf32>
    %138 = arith.mulf %137, %136 : vector<8x64xf32>
    %139 = math.tanh %138 : vector<8x64xf32>
    %cst_57 = arith.constant 1.000000e+00 : f32
    %140 = vector.broadcast %cst_57 : f32 to vector<8x64xf32>
    %141 = arith.addf %140, %139 : vector<8x64xf32>
    %142 = arith.mulf %131, %141 : vector<8x64xf32>
    %c352 = arith.constant 352 : index
    %c0_58 = arith.constant 0 : index
    %143 = vector.load %arg2[%c352, %c0_58] : memref<736x128xf32, #tpu.memory_space<vmem>>, vector<64x32xf32>
    %cst_59 = arith.constant dense<0.000000e+00> : vector<8x32xf32>
    %144 = tpu.matmul %142, %143, %cst_59 {dimension_numbers = #tpu.dot_dimension_numbers<[1], [0], [0], [1], [0, 0, 1, 1], [], []>} : vector<8x64xf32>, vector<64x32xf32>, vector<8x32xf32> -> vector<8x32xf32>
    %145 = arith.addf %102, %144 : vector<8x32xf32>
    %c416 = arith.constant 416 : index
    %c0_60 = arith.constant 0 : index
    %146 = vector.load %arg2[%c416, %c0_60] : memref<736x128xf32, #tpu.memory_space<vmem>>, vector<1x32xf32>
    %147 = vector.broadcast %146 : vector<1x32xf32> to vector<8x32xf32>
    %148 = arith.addf %145, %147 : vector<8x32xf32>
    %c424 = arith.constant 424 : index
    %c0_61 = arith.constant 0 : index
    %149 = vector.load %arg2[%c424, %c0_61] : memref<736x128xf32, #tpu.memory_space<vmem>>, vector<1x32xf32>
    %c432 = arith.constant 432 : index
    %c0_62 = arith.constant 0 : index
    %150 = vector.load %arg2[%c432, %c0_62] : memref<736x128xf32, #tpu.memory_space<vmem>>, vector<1x32xf32>
    %cst_63 = arith.constant dense<0.000000e+00> : vector<8xf32>
    %151 = vector.multi_reduction <add>, %148, %cst_63 [1] : vector<8x32xf32> to vector<8xf32>
    %152 = vector.shape_cast %151 : vector<8xf32> to vector<8x1xf32>
    %cst_64 = arith.constant 3.200000e+01 : f32
    %153 = vector.broadcast %cst_64 : f32 to vector<8x1xf32>
    %154 = arith.divf %152, %153 : vector<8x1xf32>
    %155 = vector.broadcast %154 : vector<8x1xf32> to vector<8x32xf32>
    %156 = arith.subf %148, %155 : vector<8x32xf32>
    %157 = arith.mulf %156, %156 : vector<8x32xf32>
    %cst_65 = arith.constant dense<0.000000e+00> : vector<8xf32>
    %158 = vector.multi_reduction <add>, %157, %cst_65 [1] : vector<8x32xf32> to vector<8xf32>
    %159 = vector.shape_cast %158 : vector<8xf32> to vector<8x1xf32>
    %cst_66 = arith.constant 3.200000e+01 : f32
    %160 = vector.broadcast %cst_66 : f32 to vector<8x1xf32>
    %161 = arith.divf %159, %160 : vector<8x1xf32>
    %cst_67 = arith.constant 9.99999974E-6 : f32
    %162 = vector.broadcast %cst_67 : f32 to vector<8x1xf32>
    %163 = arith.addf %161, %162 : vector<8x1xf32>
    %164 = math.rsqrt %163 : vector<8x1xf32>
    %165 = vector.broadcast %164 : vector<8x1xf32> to vector<8x32xf32>
    %166 = arith.mulf %156, %165 : vector<8x32xf32>
    %167 = vector.broadcast %149 : vector<1x32xf32> to vector<8x32xf32>
    %168 = arith.mulf %166, %167 : vector<8x32xf32>
    %169 = vector.broadcast %150 : vector<1x32xf32> to vector<8x32xf32>
    %170 = arith.addf %168, %169 : vector<8x32xf32>
    %c440 = arith.constant 440 : index
    %c0_68 = arith.constant 0 : index
    %171 = vector.load %arg2[%c440, %c0_68] : memref<736x128xf32, #tpu.memory_space<vmem>>, vector<32x96xf32>
    %cst_69 = arith.constant dense<0.000000e+00> : vector<8x96xf32>
    %172 = tpu.matmul %170, %171, %cst_69 {dimension_numbers = #tpu.dot_dimension_numbers<[1], [0], [0], [1], [0, 0, 1, 1], [], []>} : vector<8x32xf32>, vector<32x96xf32>, vector<8x96xf32> -> vector<8x96xf32>
    %c472 = arith.constant 472 : index
    %c0_70 = arith.constant 0 : index
    %173 = vector.load %arg2[%c472, %c0_70] : memref<736x128xf32, #tpu.memory_space<vmem>>, vector<1x96xf32>
    %174 = vector.broadcast %173 : vector<1x96xf32> to vector<8x96xf32>
    %175 = arith.addf %172, %174 : vector<8x96xf32>
    %176 = vector.extract_strided_slice %175 {offsets = [0, 0], sizes = [8, 32], strides = [1, 1]} : vector<8x96xf32> to vector<8x32xf32>
    %177 = vector.extract_strided_slice %175 {offsets = [0, 32], sizes = [8, 32], strides = [1, 1]} : vector<8x96xf32> to vector<8x32xf32>
    %178 = vector.extract_strided_slice %175 {offsets = [0, 64], sizes = [8, 32], strides = [1, 1]} : vector<8x96xf32> to vector<8x32xf32>
    %179 = tpu.transpose %177, [1, 0] : vector<8x32xf32> -> vector<32x8xf32>
    %180 = tpu.concatenate %179, %179, %179, %179 in 1 : vector<32x8xf32>, vector<32x8xf32>, vector<32x8xf32>, vector<32x8xf32> -> vector<32x32xf32>
    %181 = arith.mulf %180, %0 : vector<32x32xf32>
    %cst_71 = arith.constant dense<0.000000e+00> : vector<8x32xf32>
    %182 = tpu.matmul %176, %181, %cst_71 {dimension_numbers = #tpu.dot_dimension_numbers<[1], [0], [0], [1], [0, 0, 1, 1], [], []>} : vector<8x32xf32>, vector<32x32xf32>, vector<8x32xf32> -> vector<8x32xf32>
    %cst_72 = arith.constant dense<0xFF800000> : vector<8xf32>
    %183 = vector.multi_reduction <maximumf>, %182, %cst_72 [1] : vector<8x32xf32> to vector<8xf32>
    %184 = vector.shape_cast %183 : vector<8xf32> to vector<8x1xf32>
    %185 = vector.broadcast %184 : vector<8x1xf32> to vector<8x32xf32>
    %186 = arith.subf %182, %185 : vector<8x32xf32>
    %187 = math.exp %186 : vector<8x32xf32>
    %cst_73 = arith.constant dense<0.000000e+00> : vector<8x32xf32>
    %188 = tpu.matmul %187, %0, %cst_73 {dimension_numbers = #tpu.dot_dimension_numbers<[1], [0], [0], [1], [0, 0, 1, 1], [], []>} : vector<8x32xf32>, vector<32x32xf32>, vector<8x32xf32> -> vector<8x32xf32>
    %189 = tpu.reciprocal %188 {approx = true} : vector<8x32xf32> -> vector<8x32xf32>
    %190 = arith.mulf %187, %189 : vector<8x32xf32>
    %191 = tpu.concatenate %178, %178, %178, %178 in 0 : vector<8x32xf32>, vector<8x32xf32>, vector<8x32xf32>, vector<8x32xf32> -> vector<32x32xf32>
    %192 = arith.mulf %191, %0 : vector<32x32xf32>
    %cst_74 = arith.constant dense<0.000000e+00> : vector<8x32xf32>
    %193 = tpu.matmul %190, %192, %cst_74 {dimension_numbers = #tpu.dot_dimension_numbers<[1], [0], [0], [1], [0, 0, 1, 1], [], []>} : vector<8x32xf32>, vector<32x32xf32>, vector<8x32xf32> -> vector<8x32xf32>
    %c480 = arith.constant 480 : index
    %c0_75 = arith.constant 0 : index
    %194 = vector.load %arg2[%c480, %c0_75] : memref<736x128xf32, #tpu.memory_space<vmem>>, vector<32x32xf32>
    %cst_76 = arith.constant dense<0.000000e+00> : vector<8x32xf32>
    %195 = tpu.matmul %193, %194, %cst_76 {dimension_numbers = #tpu.dot_dimension_numbers<[1], [0], [0], [1], [0, 0, 1, 1], [], []>} : vector<8x32xf32>, vector<32x32xf32>, vector<8x32xf32> -> vector<8x32xf32>
    %196 = arith.addf %148, %195 : vector<8x32xf32>
    %c512 = arith.constant 512 : index
    %c0_77 = arith.constant 0 : index
    %197 = vector.load %arg2[%c512, %c0_77] : memref<736x128xf32, #tpu.memory_space<vmem>>, vector<1x32xf32>
    %198 = vector.broadcast %197 : vector<1x32xf32> to vector<8x32xf32>
    %199 = arith.addf %196, %198 : vector<8x32xf32>
    %c520 = arith.constant 520 : index
    %c0_78 = arith.constant 0 : index
    %200 = vector.load %arg2[%c520, %c0_78] : memref<736x128xf32, #tpu.memory_space<vmem>>, vector<1x32xf32>
    %c528 = arith.constant 528 : index
    %c0_79 = arith.constant 0 : index
    %201 = vector.load %arg2[%c528, %c0_79] : memref<736x128xf32, #tpu.memory_space<vmem>>, vector<1x32xf32>
    %cst_80 = arith.constant dense<0.000000e+00> : vector<8xf32>
    %202 = vector.multi_reduction <add>, %199, %cst_80 [1] : vector<8x32xf32> to vector<8xf32>
    %203 = vector.shape_cast %202 : vector<8xf32> to vector<8x1xf32>
    %cst_81 = arith.constant 3.200000e+01 : f32
    %204 = vector.broadcast %cst_81 : f32 to vector<8x1xf32>
    %205 = arith.divf %203, %204 : vector<8x1xf32>
    %206 = vector.broadcast %205 : vector<8x1xf32> to vector<8x32xf32>
    %207 = arith.subf %199, %206 : vector<8x32xf32>
    %208 = arith.mulf %207, %207 : vector<8x32xf32>
    %cst_82 = arith.constant dense<0.000000e+00> : vector<8xf32>
    %209 = vector.multi_reduction <add>, %208, %cst_82 [1] : vector<8x32xf32> to vector<8xf32>
    %210 = vector.shape_cast %209 : vector<8xf32> to vector<8x1xf32>
    %cst_83 = arith.constant 3.200000e+01 : f32
    %211 = vector.broadcast %cst_83 : f32 to vector<8x1xf32>
    %212 = arith.divf %210, %211 : vector<8x1xf32>
    %cst_84 = arith.constant 9.99999974E-6 : f32
    %213 = vector.broadcast %cst_84 : f32 to vector<8x1xf32>
    %214 = arith.addf %212, %213 : vector<8x1xf32>
    %215 = math.rsqrt %214 : vector<8x1xf32>
    %216 = vector.broadcast %215 : vector<8x1xf32> to vector<8x32xf32>
    %217 = arith.mulf %207, %216 : vector<8x32xf32>
    %218 = vector.broadcast %200 : vector<1x32xf32> to vector<8x32xf32>
    %219 = arith.mulf %217, %218 : vector<8x32xf32>
    %220 = vector.broadcast %201 : vector<1x32xf32> to vector<8x32xf32>
    %221 = arith.addf %219, %220 : vector<8x32xf32>
    %c536 = arith.constant 536 : index
    %c0_85 = arith.constant 0 : index
    %222 = vector.load %arg2[%c536, %c0_85] : memref<736x128xf32, #tpu.memory_space<vmem>>, vector<32x64xf32>
    %cst_86 = arith.constant dense<0.000000e+00> : vector<8x64xf32>
    %223 = tpu.matmul %221, %222, %cst_86 {dimension_numbers = #tpu.dot_dimension_numbers<[1], [0], [0], [1], [0, 0, 1, 1], [], []>} : vector<8x32xf32>, vector<32x64xf32>, vector<8x64xf32> -> vector<8x64xf32>
    %c568 = arith.constant 568 : index
    %c0_87 = arith.constant 0 : index
    %224 = vector.load %arg2[%c568, %c0_87] : memref<736x128xf32, #tpu.memory_space<vmem>>, vector<1x64xf32>
    %225 = vector.broadcast %224 : vector<1x64xf32> to vector<8x64xf32>
    %226 = arith.addf %223, %225 : vector<8x64xf32>
    %cst_88 = arith.constant 5.000000e-01 : f32
    %227 = vector.broadcast %cst_88 : f32 to vector<8x64xf32>
    %228 = arith.mulf %227, %226 : vector<8x64xf32>
    %cst_89 = arith.constant 4.471500e-02 : f32
    %229 = vector.broadcast %cst_89 : f32 to vector<8x64xf32>
    %230 = arith.mulf %229, %226 : vector<8x64xf32>
    %231 = arith.mulf %230, %226 : vector<8x64xf32>
    %232 = arith.mulf %231, %226 : vector<8x64xf32>
    %233 = arith.addf %226, %232 : vector<8x64xf32>
    %cst_90 = arith.constant 0.797884583 : f32
    %234 = vector.broadcast %cst_90 : f32 to vector<8x64xf32>
    %235 = arith.mulf %234, %233 : vector<8x64xf32>
    %236 = math.tanh %235 : vector<8x64xf32>
    %cst_91 = arith.constant 1.000000e+00 : f32
    %237 = vector.broadcast %cst_91 : f32 to vector<8x64xf32>
    %238 = arith.addf %237, %236 : vector<8x64xf32>
    %239 = arith.mulf %228, %238 : vector<8x64xf32>
    %c576 = arith.constant 576 : index
    %c0_92 = arith.constant 0 : index
    %240 = vector.load %arg2[%c576, %c0_92] : memref<736x128xf32, #tpu.memory_space<vmem>>, vector<64x32xf32>
    %cst_93 = arith.constant dense<0.000000e+00> : vector<8x32xf32>
    %241 = tpu.matmul %239, %240, %cst_93 {dimension_numbers = #tpu.dot_dimension_numbers<[1], [0], [0], [1], [0, 0, 1, 1], [], []>} : vector<8x64xf32>, vector<64x32xf32>, vector<8x32xf32> -> vector<8x32xf32>
    %242 = arith.addf %199, %241 : vector<8x32xf32>
    %c640 = arith.constant 640 : index
    %c0_94 = arith.constant 0 : index
    %243 = vector.load %arg2[%c640, %c0_94] : memref<736x128xf32, #tpu.memory_space<vmem>>, vector<1x32xf32>
    %244 = vector.broadcast %243 : vector<1x32xf32> to vector<8x32xf32>
    %245 = arith.addf %242, %244 : vector<8x32xf32>
    %c648 = arith.constant 648 : index
    %c0_95 = arith.constant 0 : index
    %246 = vector.load %arg2[%c648, %c0_95] : memref<736x128xf32, #tpu.memory_space<vmem>>, vector<1x32xf32>
    %c656 = arith.constant 656 : index
    %c0_96 = arith.constant 0 : index
    %247 = vector.load %arg2[%c656, %c0_96] : memref<736x128xf32, #tpu.memory_space<vmem>>, vector<1x32xf32>
    %cst_97 = arith.constant dense<0.000000e+00> : vector<8xf32>
    %248 = vector.multi_reduction <add>, %245, %cst_97 [1] : vector<8x32xf32> to vector<8xf32>
    %249 = vector.shape_cast %248 : vector<8xf32> to vector<8x1xf32>
    %cst_98 = arith.constant 3.200000e+01 : f32
    %250 = vector.broadcast %cst_98 : f32 to vector<8x1xf32>
    %251 = arith.divf %249, %250 : vector<8x1xf32>
    %252 = vector.broadcast %251 : vector<8x1xf32> to vector<8x32xf32>
    %253 = arith.subf %245, %252 : vector<8x32xf32>
    %254 = arith.mulf %253, %253 : vector<8x32xf32>
    %cst_99 = arith.constant dense<0.000000e+00> : vector<8xf32>
    %255 = vector.multi_reduction <add>, %254, %cst_99 [1] : vector<8x32xf32> to vector<8xf32>
    %256 = vector.shape_cast %255 : vector<8xf32> to vector<8x1xf32>
    %cst_100 = arith.constant 3.200000e+01 : f32
    %257 = vector.broadcast %cst_100 : f32 to vector<8x1xf32>
    %258 = arith.divf %256, %257 : vector<8x1xf32>
    %cst_101 = arith.constant 9.99999974E-6 : f32
    %259 = vector.broadcast %cst_101 : f32 to vector<8x1xf32>
    %260 = arith.addf %258, %259 : vector<8x1xf32>
    %261 = math.rsqrt %260 : vector<8x1xf32>
    %262 = vector.broadcast %261 : vector<8x1xf32> to vector<8x32xf32>
    %263 = arith.mulf %253, %262 : vector<8x32xf32>
    %264 = vector.broadcast %246 : vector<1x32xf32> to vector<8x32xf32>
    %265 = arith.mulf %263, %264 : vector<8x32xf32>
    %266 = vector.broadcast %247 : vector<1x32xf32> to vector<8x32xf32>
    %267 = arith.addf %265, %266 : vector<8x32xf32>
    %cst_102 = arith.constant dense<0.000000e+00> : vector<32xf32>
    %268 = vector.multi_reduction <add>, %267, %cst_102 [0] : vector<8x32xf32> to vector<32xf32>
    %269 = vector.shape_cast %268 : vector<32xf32> to vector<1x32xf32>
    %cst_103 = arith.constant 8.000000e+00 : f32
    %270 = vector.broadcast %cst_103 : f32 to vector<1x32xf32>
    %271 = arith.divf %269, %270 : vector<1x32xf32>
    %c664 = arith.constant 664 : index
    %c0_104 = arith.constant 0 : index
    %272 = vector.load %arg2[%c664, %c0_104] : memref<736x128xf32, #tpu.memory_space<vmem>>, vector<32x24xf32>
    %cst_105 = arith.constant dense<0.000000e+00> : vector<1x24xf32>
    %273 = tpu.matmul %271, %272, %cst_105 {dimension_numbers = #tpu.dot_dimension_numbers<[1], [0], [0], [1], [0, 0, 1, 1], [], []>} : vector<1x32xf32>, vector<32x24xf32>, vector<1x24xf32> -> vector<1x24xf32>
    %c696 = arith.constant 696 : index
    %c0_106 = arith.constant 0 : index
    %274 = vector.load %arg2[%c696, %c0_106] : memref<736x128xf32, #tpu.memory_space<vmem>>, vector<1x24xf32>
    %275 = arith.addf %273, %274 : vector<1x24xf32>
    %cst_107 = arith.constant 0.000000e+00 : f32
    %276 = vector.broadcast %cst_107 : f32 to vector<1x24xf32>
    %277 = arith.maximumf %275, %276 : vector<1x24xf32>
    %c704 = arith.constant 704 : index
    %c0_108 = arith.constant 0 : index
    %278 = vector.load %arg2[%c704, %c0_108] : memref<736x128xf32, #tpu.memory_space<vmem>>, vector<24x128xf32>
    %cst_109 = arith.constant dense<0.000000e+00> : vector<1x128xf32>
    %279 = tpu.matmul %277, %278, %cst_109 {dimension_numbers = #tpu.dot_dimension_numbers<[1], [0], [0], [1], [0, 0, 1, 1], [], []>} : vector<1x24xf32>, vector<24x128xf32>, vector<1x128xf32> -> vector<1x128xf32>
    %c728 = arith.constant 728 : index
    %c0_110 = arith.constant 0 : index
    %280 = vector.load %arg2[%c728, %c0_110] : memref<736x128xf32, #tpu.memory_space<vmem>>, vector<1x128xf32>
    %281 = arith.addf %279, %280 : vector<1x128xf32>
    %c0_111 = arith.constant 0 : index
    %c0_112 = arith.constant 0 : index
    %c0_113 = arith.constant 0 : index
    %282 = vector.load %arg3[%c0_111, %c0_112, %c0_113] : memref<1x1x128xf32, #tpu.memory_space<vmem>>, vector<1x1x128xf32>
    %283 = vector.shape_cast %282 : vector<1x1x128xf32> to vector<1x128xf32>
    %284 = vector.shape_cast %281 : vector<1x128xf32> to vector<1x1x128xf32>
    tpu.vector_store %arg3[%c0_111, %c0_112, %c0_113], %284 {strides = array<i32>} : memref<1x1x128xf32, #tpu.memory_space<vmem>>, vector<1x1x128xf32>,
    return
  }
  func.func @transform_0(%arg0: i32) -> (i32, i32, i32) {
    %c0_i32 = arith.constant 0 : i32
    %c0_i32_0 = arith.constant 0 : i32
    %c0_i32_1 = arith.constant 0 : i32
    return %arg0, %c0_i32, %c0_i32_0 : i32, i32, i32
  }
  func.func @transform_1(%arg0: i32) -> (i32, i32) {
    %c0_i32 = arith.constant 0 : i32
    %c0_i32_0 = arith.constant 0 : i32
    %c0_i32_1 = arith.constant 0 : i32
    return %c0_i32, %c0_i32_0 : i32, i32
  }
  func.func @transform_2(%arg0: i32) -> (i32, i32, i32) {
    %c0_i32 = arith.constant 0 : i32
    %c0_i32_0 = arith.constant 0 : i32
    %c0_i32_1 = arith.constant 0 : i32
    return %arg0, %c0_i32, %c0_i32_0 : i32, i32, i32
  }
}

</mosaic_0001>

<llo_original>
// kernel: whisper_classifier_forward.1
$region0: #{whisper_classifier_forward.1}
  #allocation0 [shape = 'u32[]', space=smem, size = 0x4, offset = 0x4, fixed_abs, tag = 'smem constant byte address 0x4 - core index']
  #allocation1 [shape = 'u32[144,128]{1,0:T(1,128)}', space=vmem, size = 0x12000, scoped, tag = 'internal scratch']
  #allocation2 [shape = 'f32[24,32]{1,0:T(8,128)}', space=vmem, size = 0x3000, scoped, tag = 'scratch operand']
  %s0 = inlined_call_operand.vmem [shape: f32[2,18,16], index: 0, kind: input, shape index: {}]
  %s1 = inlined_call_operand.hbm [shape: f32[736,128], index: 1, kind: input, shape index: {}]
  %s2 = inlined_call_operand.hbm [shape: f32[2,1,128], index: 2, kind: output, shape index: {}]
  %s3 = sld [smem:[#allocation0]]
  $region45: #{whisper_classifier_forward.1} parent=0
    _
  %s5 = ssub.s32 1, %s3
  %s6 = scalar_select 0, %s5, %s3
  $region1: #{whisper_classifier_forward.1} parent=0
    #allocation3 [shape = 'u8[376832]{0}', space=vmem, size = 0x5c000, scoped, tag = 'input window, operand 1, single buffered']
    #allocation4 [shape = 's32[2]{0}', space=sflag, size = 0x8, scoped, tag = 'scoped memory for whisper_classifier_forward.1']
    #allocation5 [shape = 's32[2]{0}', space=sflag, size = 0x8, scoped, tag = 'scoped memory for whisper_classifier_forward.1']
    #allocation6 [shape = 'u8[1024]{0}', space=vmem, size = 0x400, scoped, tag = 'output window, operand 0']
    %7 = vsyncpa [#allocation4], 0
    %8 = vsyncpa [#allocation5], 0
    %s9 = scalar_lea.sflag [#allocation5], 1
    %10 = vsyncpa %s9, 0
    loop: start=0, step=1, limit=4
    $region2: #{whisper_classifier_forward.1} parent=1 // loop_pre_header
      _
    $region3: #{whisper_classifier_forward.1} parent=1 // loop_header
      %s12 = sphi 0, %s16
      %p13 = scmp.ge.s32.totalorder %s12, 4
      %s22 = sphi 0, %s24
      %s25 = sphi 0, %s22
      %s26 = sphi 0, %s25
      %s42 = sphi 0, %s26
      %s46 = sphi 0, %s46
      %s48 = sphi 0, %s46
      %s49 = sphi 0, %s48
      %s63 = sphi 0, %s49
      %s69 = sphi 0, %s71
      %s72 = sphi 0, %s69
      %s73 = sphi 0, %s72
      %s89 = sphi 0, %s73
    $region4: #{whisper_classifier_forward.1} parent=1 // loop_header_branch
      %15 = sbr.rel (%p13) target = $region8
    $region5: #{whisper_classifier_forward.1} parent=1 // loop_body
      %s17 = ssub.s32 %s12, 1
      %s18 = ssub.s32 %s12, 2
      %s19 = sadd.s32 %s12, 1
      %s20 = ssub.s32 %s12, %s19
      %p21 = scmp.eq.s32.totalorder %s20, 0
      %s23 = sadd.s32 %s22, 1
      %s24 = scalar_select %p21, %s22, %s23
      %p27 = pneg %p21
      %p28 = scmp.eq.s32.totalorder %s12, 1
      %p29 = por %p27, %p28
      %p30 = scmp.ne.s32.totalorder %s22, %s25
      %p31 = scmp.eq.s32.totalorder %s12, 0
      %p32 = por %p30, %p31
      %p33 = scmp.ne.s32.totalorder %s22, %s25
      %p34 = scmp.eq.s32.totalorder %s17, 1
      %p35 = por %p33, %p34
      %p36 = scmp.ne.s32.totalorder %s25, %s26
      %p37 = scmp.eq.s32.totalorder %s17, 0
      %p38 = por %p36, %p37
      %p39 = scmp.ne.s32.totalorder %s25, %s26
      %p40 = scmp.eq.s32.totalorder %s18, 1
      %p41 = por %p39, %p40
      %p43 = scmp.ne.s32.totalorder %s26, %s42
      %p44 = scmp.eq.s32.totalorder %s18, 0
      %p45 = por %p43, %p44
      %s47 = sadd.s32 %s46, 1
      %p50 = scmp.eq.s32.totalorder %s12, 1
      %p51 = scmp.ne.s32.totalorder %s46, %s48
      %p52 = scmp.eq.s32.totalorder %s12, 0
      %p53 = por %p51, %p52
      %p54 = scmp.ne.s32.totalorder %s46, %s48
      %p55 = scmp.eq.s32.totalorder %s17, 1
      %p56 = por %p54, %p55
      %p57 = scmp.ne.s32.totalorder %s48, %s49
      %p58 = scmp.eq.s32.totalorder %s17, 0
      %p59 = por %p57, %p58
      %p60 = scmp.ne.s32.totalorder %s48, %s49
      %p61 = scmp.eq.s32.totalorder %s18, 1
      %p62 = por %p60, %p61
      %p64 = scmp.ne.s32.totalorder %s49, %s63
      %p65 = scmp.eq.s32.totalorder %s18, 0
      %p66 = por %p64, %p65
      %s67 = ssub.s32 %s12, %s19
      %p68 = scmp.eq.s32.totalorder %s67, 0
      %s70 = sadd.s32 %s69, 1
      %s71 = scalar_select %p68, %s69, %s70
      %p74 = pneg %p68
      %p75 = scmp.eq.s32.totalorder %s12, 1
      %p76 = por %p74, %p75
      %p77 = scmp.ne.s32.totalorder %s69, %s72
      %p78 = scmp.eq.s32.totalorder %s12, 0
      %p79 = por %p77, %p78
      %p80 = scmp.ne.s32.totalorder %s69, %s72
      %p81 = scmp.eq.s32.totalorder %s17, 1
      %p82 = por %p80, %p81
      %p83 = scmp.ne.s32.totalorder %s72, %s73
      %p84 = scmp.eq.s32.totalorder %s17, 0
      %p85 = por %p83, %p84
      %p86 = scmp.ne.s32.totalorder %s72, %s73
      %p87 = scmp.eq.s32.totalorder %s18, 1
      %p88 = por %p86, %p87
      %p90 = scmp.ne.s32.totalorder %s73, %s89
      %p91 = scmp.eq.s32.totalorder %s18, 0
      %p92 = por %p90, %p91
      %p93 = scmp.le.s32.totalorder 1, %s12
      %p94 = scmp.lt.s32.totalorder %s12, 3
      %p95 = pnand %p93, %p94
      %p96 = pneg %p95
      // Predicated region
      $region9: #{whisper_classifier_forward.1} parent=5 // pred_check
        _
      $region10: #{whisper_classifier_forward.1} parent=5 // pred_check_branch
        %98 = sbr.rel (%p95) target = $region12
      $region11: #{whisper_classifier_forward.1} parent=5 // pred_region
        %s99 = ssub.s32 %s12, 1
        // Predicated region
        $region13: #{whisper_classifier_forward.1} parent=11 // pred_check
          %p100 = pneg %p59
        $region14: #{whisper_classifier_forward.1} parent=11 // pred_check_branch
          %102 = sbr.rel (%p100) target = $region16
        $region15: #{whisper_classifier_forward.1} parent=11 // pred_region
          %s104 = ssub.s32 11776, 11776
          %105 = vsyncadd [#allocation4], %s104
          %s106 = sshll.u32 [#allocation3], 4
          %s107 = int_to_ptr.vmem [resolvable:$true] %s106
          %112 = dma.hbm_to_vmem [thread:$0]  %s1, 11776, %s107, [#allocation4], 128, 128, 8
        $region16: #{whisper_classifier_forward.1} parent=11 // pred_fallthru
          _
      $region12: #{whisper_classifier_forward.1} parent=5 // pred_fallthru
        _
      %p113 = scmp.lt.s32.totalorder %s12, 2
      // Predicated region
      $region17: #{whisper_classifier_forward.1} parent=5 // pred_check
        %p114 = pneg %p113
      $region18: #{whisper_classifier_forward.1} parent=5 // pred_check_branch
        %116 = sbr.rel (%p114) target = $region20
      $region19: #{whisper_classifier_forward.1} parent=5 // pred_region
        // Predicated region
        $region21: #{whisper_classifier_forward.1} parent=19 // pred_check
          %p117 = pneg %p32
        $region22: #{whisper_classifier_forward.1} parent=19 // pred_check_branch
          %119 = sbr.rel (%p117) target = $region24
        $region23: #{whisper_classifier_forward.1} parent=19 // pred_region
          %p120 = scmp.lt.s32.totalorder %s12, 1
          %s121 = scalar_select %p120, %s12, 1
          %s122 = smul.addr %s121, 3
          %s123 = smul.addr %s122, 8
          %s124 = scalar_lea.vmem %s0, %s123
        $region24: #{whisper_classifier_forward.1} parent=19 // pred_fallthru
          _
      $region20: #{whisper_classifier_forward.1} parent=5 // pred_fallthru
        _
      %p125 = scmp.le.s32.totalorder 1, %s12
      %p126 = scmp.lt.s32.totalorder %s12, 3
      %p127 = pnand %p125, %p126
      %p128 = pneg %p127
      // Predicated region
      $region25: #{whisper_classifier_forward.1} parent=5 // pred_check
        _
      $region26: #{whisper_classifier_forward.1} parent=5 // pred_check_branch
        %130 = sbr.rel (%p127) target = $region28
      $region27: #{whisper_classifier_forward.1} parent=5 // pred_region
        %s131 = ssub.s32 %s12, 1
        // Predicated region
        $region29: #{whisper_classifier_forward.1} parent=27 // pred_check
          %p132 = pneg %p59
        $region30: #{whisper_classifier_forward.1} parent=27 // pred_check_branch
          %134 = sbr.rel (%p132) target = $region32
        $region31: #{whisper_classifier_forward.1} parent=27 // pred_region
          %135 = dma.done [#allocation4], 11776
        $region32: #{whisper_classifier_forward.1} parent=27 // pred_fallthru
          _
        %p136 = scmp.lt.s32.totalorder %s17, 1
        %s137 = scalar_select %p136, %s17, 1
        %s138 = smul.addr %s137, 3
        %s139 = smul.addr %s138, 8
        %s140 = scalar_lea.vmem %s0, %s139
        %p141 = pneg %p38
        %p142 = pneg %p35
        %p143 = pneg %p59
        %p144 = pneg %p56
        %p145 = pneg %p85
        %p146 = pneg %p82
        %s147 = sand.u32 %s72, 1
        %s148 = scalar_lea.sflag [#allocation5], %s147
        %s149 = sand.u32 %s72, 1
        %s150 = scalar_lea.vmem [#allocation6], %s149
        %p151 = scmp.lt.s32.totalorder %s17, 1
        %s152 = scalar_select %p151, %s17, 1
        %s153 = smul.addr %s152, 3
        %s154 = smul.addr %s153, 8
        %s155 = scalar_lea.vmem %s0, %s154
        %v156 = vld [vmem:[#allocation3 + $0xa8] sm:$0xff]
        %v157 = vld [vmem:[#allocation3 + $0xb0] sm:$0xff]
        %v158 = vld [vmem:[#allocation3 + $0xb8] sm:$0xff]
        %v159 = vld [vmem:[#allocation3 + $0xc0] sm:$0xff]
        %v160 = vld [vmem:[%s155] sm:$0xff]
        %v161 = vld [vmem:[%s155 + $0x8] sm:$0xff]
        %v162 = vld [vmem:[%s155 + $0x10] sm:$0x3]
        %vm166 = vcmask 1046528
        %v167 = vrot.slane %v160, 1
        %v168 = vrot.slane %v161, 1
        %v169 = vsel %vm166, %v167, %v168
        %v170 = vrot.slane %v162, 1
        %v171 = vsel %vm166, %v168, %v170
        %172 = vrot.lane.b32.xlu0 %v169, 16
        %v173 = vpop.permute.xlu0 %172
        %174 = vrot.lane.b32.xlu0 %v171, 16
        %v175 = vpop.permute.xlu0 %174
        %vm178 = vcmask 1045504
        %v179 = vrot.slane %v160, 2
        %v180 = vrot.slane %v161, 2
        %v181 = vsel %vm178, %v179, %v180
        %v182 = vrot.slane %v162, 2
        %v183 = vsel %vm178, %v180, %v182
        %184 = vrot.lane.b32.xlu0 %v181, 32
        %v185 = vpop.permute.xlu0 %184
        %186 = vrot.lane.b32.xlu0 %v183, 32
        %v187 = vpop.permute.xlu0 %186
        %vm190 = vcmask 130048
        %v191 = vsel %vm190, %v160, %v173
        %v192 = vsel %vm190, %v161, %v175
        %vm193 = vcmask 261120
        %v194 = vsel %vm193, %v191, %v185
        %v195 = vsel %vm193, %v192, %v187
        %v196 = vld [vmem:[#allocation3] sm:$0xff]
        %v197 = vld [vmem:[#allocation3 + $0x8] sm:$0xff]
        %v198 = vld [vmem:[#allocation3 + $0x10] sm:$0xff]
        %v199 = vld [vmem:[#allocation3 + $0x18] sm:$0xff]
        %v200 = vld [vmem:[#allocation3 + $0x20] sm:$0xff]
        %v201 = vld [vmem:[#allocation3 + $0x28] sm:$0xff]
        %v202 = vld [vmem:[#allocation3 + $0x30] sm:$0x1]
        %v203 = vlaneseq
        %v204 = vshrl.u32 %v203, 7
        %v205 = vsub.s32 0, %v204
        %v206 = vrot.slane %v202, %v205
        %vm207 = vcmask 392192
        %v209 = vsel %vm207, %v194, 0
        %v212 = vsel %vm207, %v195, 0
        %214 = vmatprep.subr.mxu0 0.0
        %215 = vmatpush1.msra.mxu0 %v196
        %216 = vmatprep.subr.mxu0 0.0
        %217 = vmatpush1.msra.mxu0 %v197
        %218 = vmatprep.subr.mxu0 0.0
        %219 = vmatpush1.msra.mxu0 %v198
        %220 = vmatprep.subr.mxu0 0.0
        %221 = vmatpush1.msra.mxu0 %v199
        %222 = vmatprep.subr.mxu0 0.0
        %223 = vmatpush1.msra.mxu0 %v200
        %224 = vmatprep.subr.mxu0 0.0
        %225 = vmatpush1.msra.mxu0 %v201
        %226 = vmatprep.subr.mxu0 0.0
        %227 = vmatpush1.msra.mxu0 0.0
        %228 = vmatprep.subr.mxu0 0.0
        %229 = vmatpush1.msra.mxu0 0.0
        %230 = vmatprep.subr.mxu0 0.0
        %231 = vmatpush1.msra.mxu0 0.0
        %232 = vmatprep.subr.mxu0 0.0
        %233 = vmatpush1.msra.mxu0 0.0
        %234 = vmatprep.subr.mxu0 0.0
        %235 = vmatpush1.msra.mxu0 0.0
        %236 = vmatprep.subr.mxu0 0.0
        %237 = vmatpush1.msra.mxu0 0.0
        %238 = vmatprep.subr.mxu0 0.0
        %239 = vmatpush1.msra.mxu0 0.0
        %240 = vmatprep.subr.mxu0 0.0
        %241 = vmatpush1.msra.mxu0 0.0
        %242 = vmatprep.subr.mxu0 0.0
        %243 = vmatpush1.msra.mxu0 0.0
        %244 = vmatprep.subr.mxu0 0.0
        %245 = vmatpush1.msra.mxu0 0.0
        %246 = vmatprep.subr.mxu0 0.0
        %247 = vmatpush1.msra.mxu0 0.0
        %248 = vmatprep.subr.mxu0 0.0
        %249 = vmatpush1.msra.mxu0 0.0
        %250 = vmatprep.subr.mxu0 0.0
        %251 = vmatpush1.msra.mxu0 0.0
        %252 = vmatprep.subr.mxu0 0.0
        %253 = vmatpush1.msra.mxu0 0.0
        %254 = vmatprep.subr.mxu0 0.0
        %255 = vmatpush1.msra.mxu0 0.0
        %256 = vmatprep.subr.mxu0 0.0
        %257 = vmatpush1.msra.mxu0 0.0
        %258 = vmatprep.subr.mxu0 0.0
        %259 = vmatpush1.msra.mxu0 0.0
        %260 = vmatprep.subr.mxu0 0.0
        %261 = vmatpush1.msra.mxu0 0.0
        %262 = vmatprep.subr.mxu0 0.0
        %263 = vmatpush1.msra.mxu0 0.0
        %264 = vmatprep.subr.mxu0 0.0
        %265 = vmatpush1.msra.mxu0 0.0
        %266 = vmatprep.subr.mxu0 0.0
        %267 = vmatpush1.msra.mxu0 0.0
        %268 = vmatprep.subr.mxu0 0.0
        %269 = vmatpush1.msra.mxu0 0.0
        %270 = vmatprep.subr.mxu0 0.0
        %271 = vmatpush1.msra.mxu0 0.0
        %272 = vmatprep.subr.mxu0 0.0
        %273 = vmatpush1.msra.mxu0 0.0
        %274 = vmatprep.subr.mxu0 0.0
        %275 = vmatpush1.msra.mxu0 0.0
        %276 = vmatprep.subr.mxu0 0.0
        %277 = vmatpush1.msra.mxu0 0.0
        %278 = vmatprep.mubr.f32.mxu0 0.0
        %279 = vmatmul.mubr.f32.gmra.mrb[0].mxu0 %v209
        %v280 = vpop.f32.mrb[0].mxu0
        %v281 = vadd.f32 %v206, %v280
        %v282 = vpop.f32.mrb[0].mxu0
        %283 = vmatprep.mubr.f32.mxu0 0.0
        %284 = vmatmul.mubr.f32.gmra.mrb[0].mxu0 %v212
        %v285 = vpop.f32.mrb[0].mxu0
        %v286 = vadd.f32 %v206, %v285
        %v287 = vpop.f32.mrb[0].mxu0
        %288 = vdwg.mxu0
        %v289 = vmul.f32 %v281, 0.5
        %v290 = vmul.f32 %v286, 0.5
        %v291 = vmul.f32 %v281, 0.044715
        %v292 = vmul.f32 %v286, 0.044715
        %v293 = vmul.f32 %v291, %v281
        %v294 = vmul.f32 %v292, %v286
        %v295 = vmul.f32 %v293, %v281
        %v296 = vmul.f32 %v294, %v286
        %v297 = vadd.f32 %v281, %v295
        %v298 = vadd.f32 %v286, %v296
        %v299 = vmul.f32 %v297, 0.7978846
        %v300 = vmul.f32 %v298, 0.7978846
        %v301 = vtanh.pop %v299
        %v302 = vtanh.pop %v300
        %v303 = vadd.f32 %v301, 1.0
        %v304 = vadd.f32 %v302, 1.0
        %v305 = vmul.f32 %v289, %v303
        %v306 = vmul.f32 %v290, %v304
        %vm307 = vcmask 253952
        %308 = vst.msk [vmem:[#allocation2] sm:$0x1] %vm307, 0.0
        %309 = vst.msk [vmem:[#allocation2 + $0x1] sm:$0xff] %vm193, %v305
        %310 = vst.msk [vmem:[#allocation2 + $0x9] sm:$0xff] %vm193, %v306
        %v311 = vld [vmem:[#allocation2] ss:$2 sm:$0xff]
        %s312 = scalar_lea.vmem [#allocation2], 1
        %v313 = vld [vmem:[%s312] ss:$2 sm:$0xff]
        %s314 = scalar_lea.vmem [#allocation2], 2
        %v315 = vld [vmem:[%s314] ss:$2 sm:$0xff]
        %317 = vrot.lane.b32.xlu0 %v313, 32
        %v318 = vpop.permute.xlu0 %317
        %321 = vrot.lane.b32.xlu0 %v315, 64
        %v322 = vpop.permute.xlu0 %321
        %v324 = vsel %vm193, %v311, %v318
        %vm325 = vcmask 523264
        %v326 = vsel %vm325, %v324, %v322
        %v327 = vld [vmem:[#allocation3 + $0x38] sm:$0xff]
        %v328 = vld [vmem:[#allocation3 + $0x40] sm:$0xff]
        %v329 = vld [vmem:[#allocation3 + $0x48] sm:$0xff]
        %v330 = vld [vmem:[#allocation3 + $0x50] sm:$0xff]
        %v331 = vld [vmem:[#allocation3 + $0x58] sm:$0xff]
        %v332 = vld [vmem:[#allocation3 + $0x60] sm:$0xff]
        %v333 = vld [vmem:[#allocation3 + $0x68] sm:$0xff]
        %v334 = vld [vmem:[#allocation3 + $0x70] sm:$0xff]
        %v335 = vld [vmem:[#allocation3 + $0x78] sm:$0xff]
        %v336 = vld [vmem:[#allocation3 + $0x80] sm:$0xff]
        %v337 = vld [vmem:[#allocation3 + $0x88] sm:$0xff]
        %v338 = vld [vmem:[#allocation3 + $0x90] sm:$0xff]
        %v339 = vld [vmem:[#allocation3 + $0x98] sm:$0x1]
        %v340 = vlaneseq
        %v341 = vshrl.u32 %v340, 7
        %v342 = vsub.s32 0, %v341
        %v343 = vrot.slane %v339, %v342
        %vm344 = vcmask 785408
        %v346 = vsel %vm344, %v326, 0
        %348 = vmatprep.subr.mxu0 0.0
        %349 = vmatpush1.msra.mxu0 %v327
        %350 = vmatprep.subr.mxu0 0.0
        %351 = vmatpush1.msra.mxu0 %v328
        %352 = vmatprep.subr.mxu0 0.0
        %353 = vmatpush1.msra.mxu0 %v329
        %354 = vmatprep.subr.mxu0 0.0
        %355 = vmatpush1.msra.mxu0 %v330
        %356 = vmatprep.subr.mxu0 0.0
        %357 = vmatpush1.msra.mxu0 %v331
        %358 = vmatprep.subr.mxu0 0.0
        %359 = vmatpush1.msra.mxu0 %v332
        %360 = vmatprep.subr.mxu0 0.0
        %361 = vmatpush1.msra.mxu0 %v333
        %362 = vmatprep.subr.mxu0 0.0
        %363 = vmatpush1.msra.mxu0 %v334
        %364 = vmatprep.subr.mxu0 0.0
        %365 = vmatpush1.msra.mxu0 %v335
        %366 = vmatprep.subr.mxu0 0.0
        %367 = vmatpush1.msra.mxu0 %v336
        %368 = vmatprep.subr.mxu0 0.0
        %369 = vmatpush1.msra.mxu0 %v337
        %370 = vmatprep.subr.mxu0 0.0
        %371 = vmatpush1.msra.mxu0 %v338
        %372 = vmatprep.subr.mxu0 0.0
        %373 = vmatpush1.msra.mxu0 0.0
        %374 = vmatprep.subr.mxu0 0.0
        %375 = vmatpush1.msra.mxu0 0.0
        %376 = vmatprep.subr.mxu0 0.0
        %377 = vmatpush1.msra.mxu0 0.0
        %378 = vmatprep.subr.mxu0 0.0
        %379 = vmatpush1.msra.mxu0 0.0
        %380 = vmatprep.subr.mxu0 0.0
        %381 = vmatpush1.msra.mxu0 0.0
        %382 = vmatprep.subr.mxu0 0.0
        %383 = vmatpush1.msra.mxu0 0.0
        %384 = vmatprep.subr.mxu0 0.0
        %385 = vmatpush1.msra.mxu0 0.0
        %386 = vmatprep.subr.mxu0 0.0
        %387 = vmatpush1.msra.mxu0 0.0
        %388 = vmatprep.subr.mxu0 0.0
        %389 = vmatpush1.msra.mxu0 0.0
        %390 = vmatprep.subr.mxu0 0.0
        %391 = vmatpush1.msra.mxu0 0.0
        %392 = vmatprep.subr.mxu0 0.0
        %393 = vmatpush1.msra.mxu0 0.0
        %394 = vmatprep.subr.mxu0 0.0
        %395 = vmatpush1.msra.mxu0 0.0
        %396 = vmatprep.subr.mxu0 0.0
        %397 = vmatpush1.msra.mxu0 0.0
        %398 = vmatprep.subr.mxu0 0.0
        %399 = vmatpush1.msra.mxu0 0.0
        %400 = vmatprep.subr.mxu0 0.0
        %401 = vmatpush1.msra.mxu0 0.0
        %402 = vmatprep.subr.mxu0 0.0
        %403 = vmatpush1.msra.mxu0 0.0
        %404 = vmatprep.subr.mxu0 0.0
        %405 = vmatpush1.msra.mxu0 0.0
        %406 = vmatprep.subr.mxu0 0.0
        %407 = vmatpush1.msra.mxu0 0.0
        %408 = vmatprep.subr.mxu0 0.0
        %409 = vmatpush1.msra.mxu0 0.0
        %410 = vmatprep.subr.mxu0 0.0
        %411 = vmatpush1.msra.mxu0 0.0
        %412 = vmatprep.mubr.f32.mxu0 0.0
        %413 = vmatmul.mubr.f32.gmra.mrb[0].mxu0 %v346
        %v414 = vpop.f32.mrb[0].mxu0
        %v415 = vadd.f32 %v343, %v414
        %v416 = vpop.f32.mrb[0].mxu0
        %417 = vdwg.mxu0
        %v418 = vmul.f32 %v415, 0.5
        %v419 = vmul.f32 %v415, 0.044715
        %v420 = vmul.f32 %v419, %v415
        %v421 = vmul.f32 %v420, %v415
        %v422 = vadd.f32 %v415, %v421
        %v423 = vmul.f32 %v422, 0.7978846
        %v424 = vtanh.pop %v423
        %v425 = vadd.f32 %v424, 1.0
        %v426 = vmul.f32 %v418, %v425
        %v427 = vld [vmem:[#allocation3 + $0xa0] sm:$0xff]
        %v428 = vadd.f32 %v426, %v427
        %v429 = vld [vmem:[#allocation3 + $0xc8] sm:$0x1]
        %v430 = vld [vmem:[#allocation3 + $0xd0] sm:$0x1]
        %v431 = vsel %vm193, %v428, 0.0
        %432 = vadd.xlane.f32.xlu0 %v431
        %v433 = vpop.xlane.xlu0 %432
        %v434 = vrcp.pop 32.0
        %v435 = vmul.f32 %v433, %v434
        %v436 = vsub.f32 %v428, %v435
        %v437 = vmul.f32 %v436, %v436
        %v438 = vsel %vm193, %v437, 0.0
        %439 = vadd.xlane.f32.xlu0 %v438
        %v440 = vpop.xlane.xlu0 %439
        %v441 = vmul.f32 %v440, %v434
        %v442 = vadd.f32 %v441, 1e-05
        %v443 = vrsqrt.pop %v442
        %v444 = vmul.f32 %v436, %v443
        %v445 = vlaneseq
        %v446 = vshrl.u32 %v445, 7
        %v447 = vsub.s32 0, %v446
        %v448 = vrot.slane %v429, %v447
        %v449 = vmul.f32 %v444, %v448
        %v450 = vlaneseq
        %v451 = vshrl.u32 %v450, 7
        %v452 = vsub.s32 0, %v451
        %v453 = vrot.slane %v430, %v452
        %v454 = vadd.f32 %v449, %v453
        %v455 = vld [vmem:[#allocation3 + $0xd8] sm:$0xff]
        %v456 = vld [vmem:[#allocation3 + $0xe0] sm:$0xff]
        %v457 = vld [vmem:[#allocation3 + $0xe8] sm:$0xff]
        %v458 = vld [vmem:[#allocation3 + $0xf0] sm:$0xff]
        %v459 = vld [vmem:[#allocation3 + $0xf8] sm:$0x1]
        %v460 = vlaneseq
        %v461 = vshrl.u32 %v460, 7
        %v462 = vsub.s32 0, %v461
        %v463 = vrot.slane %v459, %v462
        %v465 = vsel %vm193, %v454, 0
        %467 = vmatprep.subr.mxu0 0.0
        %468 = vmatpush1.msra.mxu0 %v455
        %469 = vmatprep.subr.mxu0 0.0
        %470 = vmatpush1.msra.mxu0 %v456
        %471 = vmatprep.subr.mxu0 0.0
        %472 = vmatpush1.msra.mxu0 %v457
        %473 = vmatprep.subr.mxu0 0.0
        %474 = vmatpush1.msra.mxu0 %v458
        %475 = vmatprep.subr.mxu0 0.0
        %476 = vmatpush1.msra.mxu0 0.0
        %477 = vmatprep.subr.mxu0 0.0
        %478 = vmatpush1.msra.mxu0 0.0
        %479 = vmatprep.subr.mxu0 0.0
        %480 = vmatpush1.msra.mxu0 0.0
        %481 = vmatprep.subr.mxu0 0.0
        %482 = vmatpush1.msra.mxu0 0.0
        %483 = vmatprep.subr.mxu0 0.0
        %484 = vmatpush1.msra.mxu0 0.0
        %485 = vmatprep.subr.mxu0 0.0
        %486 = vmatpush1.msra.mxu0 0.0
        %487 = vmatprep.subr.mxu0 0.0
        %488 = vmatpush1.msra.mxu0 0.0
        %489 = vmatprep.subr.mxu0 0.0
        %490 = vmatpush1.msra.mxu0 0.0
        %491 = vmatprep.subr.mxu0 0.0
        %492 = vmatpush1.msra.mxu0 0.0
        %493 = vmatprep.subr.mxu0 0.0
        %494 = vmatpush1.msra.mxu0 0.0
        %495 = vmatprep.subr.mxu0 0.0
        %496 = vmatpush1.msra.mxu0 0.0
        %497 = vmatprep.subr.mxu0 0.0
        %498 = vmatpush1.msra.mxu0 0.0
        %499 = vmatprep.subr.mxu0 0.0
        %500 = vmatpush1.msra.mxu0 0.0
        %501 = vmatprep.subr.mxu0 0.0
        %502 = vmatpush1.msra.mxu0 0.0
        %503 = vmatprep.subr.mxu0 0.0
        %504 = vmatpush1.msra.mxu0 0.0
        %505 = vmatprep.subr.mxu0 0.0
        %506 = vmatpush1.msra.mxu0 0.0
        %507 = vmatprep.subr.mxu0 0.0
        %508 = vmatpush1.msra.mxu0 0.0
        %509 = vmatprep.subr.mxu0 0.0
        %510 = vmatpush1.msra.mxu0 0.0
        %511 = vmatprep.subr.mxu0 0.0
        %512 = vmatpush1.msra.mxu0 0.0
        %513 = vmatprep.subr.mxu0 0.0
        %514 = vmatpush1.msra.mxu0 0.0
        %515 = vmatprep.subr.mxu0 0.0
        %516 = vmatpush1.msra.mxu0 0.0
        %517 = vmatprep.subr.mxu0 0.0
        %518 = vmatpush1.msra.mxu0 0.0
        %519 = vmatprep.subr.mxu0 0.0
        %520 = vmatpush1.msra.mxu0 0.0
        %521 = vmatprep.subr.mxu0 0.0
        %522 = vmatpush1.msra.mxu0 0.0
        %523 = vmatprep.subr.mxu0 0.0
        %524 = vmatpush1.msra.mxu0 0.0
        %525 = vmatprep.subr.mxu0 0.0
        %526 = vmatpush1.msra.mxu0 0.0
        %527 = vmatprep.subr.mxu0 0.0
        %528 = vmatpush1.msra.mxu0 0.0
        %529 = vmatprep.subr.mxu0 0.0
        %530 = vmatpush1.msra.mxu0 0.0
        %531 = vmatprep.mubr.f32.mxu0 0.0
        %532 = vmatmul.mubr.f32.gmra.mrb[0].mxu0 %v465
        %v533 = vpop.f32.mrb[0].mxu0
        %v534 = vadd.f32 %v463, %v533
        %v535 = vpop.f32.mrb[0].mxu0
        %536 = vdwg.mxu0
        %538 = vrot.lane.b32.xlu0 %v534, 96
        %v539 = vpop.permute.xlu0 %538
        %541 = vxpose.xlu0.b32.start [1/16] %v539, 128
        %542 = vxpose.xlu0.b32.cont [2/16] 0.0, 128
        %543 = vxpose.xlu0.b32.cont [3/16] 0.0, 128
        %544 = vxpose.xlu0.b32.cont [4/16] 0.0, 128
        %545 = vxpose.xlu0.b32.cont [5/16] 0.0, 128
        %546 = vxpose.xlu0.b32.cont [6/16] 0.0, 128
        %547 = vxpose.xlu0.b32.cont [7/16] 0.0, 128
        %548 = vxpose.xlu0.b32.cont [8/16] 0.0, 128
        %549 = vxpose.xlu0.b32.cont [9/16] 0.0, 128
        %550 = vxpose.xlu0.b32.cont [10/16] 0.0, 128
        %551 = vxpose.xlu0.b32.cont [11/16] 0.0, 128
        %552 = vxpose.xlu0.b32.cont [12/16] 0.0, 128
        %553 = vxpose.xlu0.b32.cont [13/16] 0.0, 128
        %554 = vxpose.xlu0.b32.cont [14/16] 0.0, 128
        %555 = vxpose.xlu0.b32.cont [15/16] 0.0, 128
        %556 = vxpose.xlu0.b32.end [16/16] 0.0, 128
        %v557 = vpop.trf.xlu0
        %v558 = vpop.trf.xlu0
        %v559 = vpop.trf.xlu0
        %v560 = vpop.trf.xlu0
        %v561 = vpop.trf.xlu0
        %v562 = vpop.trf.xlu0
        %v563 = vpop.trf.xlu0
        %v564 = vpop.trf.xlu0
        %v565 = vpop.trf.xlu0
        %v566 = vpop.trf.xlu0
        %v567 = vpop.trf.xlu0
        %v568 = vpop.trf.xlu0
        %v569 = vpop.trf.xlu0
        %v570 = vpop.trf.xlu0
        %v571 = vpop.trf.xlu0
        %v572 = vpop.trf.xlu0
        %577 = vrot.lane.b32.xlu0 %v557, 8
        %v578 = vpop.permute.xlu0 %577
        %579 = vrot.lane.b32.xlu0 %v558, 8
        %v580 = vpop.permute.xlu0 %579
        %581 = vrot.lane.b32.xlu0 %v559, 8
        %v582 = vpop.permute.xlu0 %581
        %583 = vrot.lane.b32.xlu0 %v560, 8
        %v584 = vpop.permute.xlu0 %583
        %589 = vrot.lane.b32.xlu0 %v557, 16
        %v590 = vpop.permute.xlu0 %589
        %591 = vrot.lane.b32.xlu0 %v558, 16
        %v592 = vpop.permute.xlu0 %591
        %593 = vrot.lane.b32.xlu0 %v559, 16
        %v594 = vpop.permute.xlu0 %593
        %595 = vrot.lane.b32.xlu0 %v560, 16
        %v596 = vpop.permute.xlu0 %595
        %601 = vrot.lane.b32.xlu0 %v557, 24
        %v602 = vpop.permute.xlu0 %601
        %603 = vrot.lane.b32.xlu0 %v558, 24
        %v604 = vpop.permute.xlu0 %603
        %605 = vrot.lane.b32.xlu0 %v559, 24
        %v606 = vpop.permute.xlu0 %605
        %607 = vrot.lane.b32.xlu0 %v560, 24
        %v608 = vpop.permute.xlu0 %607
        %vm613 = vcmask 64512
        %v614 = vsel %vm613, %v557, %v578
        %v615 = vsel %vm613, %v558, %v580
        %v616 = vsel %vm613, %v559, %v582
        %v617 = vsel %vm613, %v560, %v584
        %v618 = vsel %vm190, %v614, %v590
        %v619 = vsel %vm190, %v615, %v592
        %v620 = vsel %vm190, %v616, %v594
        %v621 = vsel %vm190, %v617, %v596
        %vm622 = vcmask 195584
        %v623 = vsel %vm622, %v618, %v602
        %v624 = vsel %vm622, %v619, %v604
        %v625 = vsel %vm622, %v620, %v606
        %v626 = vsel %vm622, %v621, %v608
        %v627 = vmul.f32 %v623, %v156
        %v628 = vmul.f32 %v624, %v157
        %v629 = vmul.f32 %v625, %v158
        %v630 = vmul.f32 %v626, %v159
        %v631 = vsel %vm193, %v534, 0
        %633 = vmatprep.subr.mxu0 0.0
        %634 = vmatpush1.msra.mxu0 %v627
        %635 = vmatprep.subr.mxu0 0.0
        %636 = vmatpush1.msra.mxu0 %v628
        %637 = vmatprep.subr.mxu0 0.0
        %638 = vmatpush1.msra.mxu0 %v629
        %639 = vmatprep.subr.mxu0 0.0
        %640 = vmatpush1.msra.mxu0 %v630
        %641 = vmatprep.subr.mxu0 0.0
        %642 = vmatpush1.msra.mxu0 0.0
        %643 = vmatprep.subr.mxu0 0.0
        %644 = vmatpush1.msra.mxu0 0.0
        %645 = vmatprep.subr.mxu0 0.0
        %646 = vmatpush1.msra.mxu0 0.0
        %647 = vmatprep.subr.mxu0 0.0
        %648 = vmatpush1.msra.mxu0 0.0
        %649 = vmatprep.subr.mxu0 0.0
        %650 = vmatpush1.msra.mxu0 0.0
        %651 = vmatprep.subr.mxu0 0.0
        %652 = vmatpush1.msra.mxu0 0.0
        %653 = vmatprep.subr.mxu0 0.0
        %654 = vmatpush1.msra.mxu0 0.0
        %655 = vmatprep.subr.mxu0 0.0
        %656 = vmatpush1.msra.mxu0 0.0
        %657 = vmatprep.subr.mxu0 0.0
        %658 = vmatpush1.msra.mxu0 0.0
        %659 = vmatprep.subr.mxu0 0.0
        %660 = vmatpush1.msra.mxu0 0.0
        %661 = vmatprep.subr.mxu0 0.0
        %662 = vmatpush1.msra.mxu0 0.0
        %663 = vmatprep.subr.mxu0 0.0
        %664 = vmatpush1.msra.mxu0 0.0
        %665 = vmatprep.subr.mxu0 0.0
        %666 = vmatpush1.msra.mxu0 0.0
        %667 = vmatprep.subr.mxu0 0.0
        %668 = vmatpush1.msra.mxu0 0.0
        %669 = vmatprep.subr.mxu0 0.0
        %670 = vmatpush1.msra.mxu0 0.0
        %671 = vmatprep.subr.mxu0 0.0
        %672 = vmatpush1.msra.mxu0 0.0
        %673 = vmatprep.subr.mxu0 0.0
        %674 = vmatpush1.msra.mxu0 0.0
        %675 = vmatprep.subr.mxu0 0.0
        %676 = vmatpush1.msra.mxu0 0.0
        %677 = vmatprep.subr.mxu0 0.0
        %678 = vmatpush1.msra.mxu0 0.0
        %679 = vmatprep.subr.mxu0 0.0
        %680 = vmatpush1.msra.mxu0 0.0
        %681 = vmatprep.subr.mxu0 0.0
        %682 = vmatpush1.msra.mxu0 0.0
        %683 = vmatprep.subr.mxu0 0.0
        %684 = vmatpush1.msra.mxu0 0.0
        %685 = vmatprep.subr.mxu0 0.0
        %686 = vmatpush1.msra.mxu0 0.0
        %687 = vmatprep.subr.mxu0 0.0
        %688 = vmatpush1.msra.mxu0 0.0
        %689 = vmatprep.subr.mxu0 0.0
        %690 = vmatpush1.msra.mxu0 0.0
        %691 = vmatprep.subr.mxu0 0.0
        %692 = vmatpush1.msra.mxu0 0.0
        %693 = vmatprep.subr.mxu0 0.0
        %694 = vmatpush1.msra.mxu0 0.0
        %695 = vmatprep.subr.mxu0 0.0
        %696 = vmatpush1.msra.mxu0 0.0
        %697 = vmatprep.mubr.f32.mxu0 0.0
        %698 = vmatmul.mubr.f32.gmra.mrb[0].mxu0 %v631
        %v699 = vpop.f32.mrb[0].mxu0
        %v700 = vadd.f32 0.0, %v699
        %v701 = vpop.f32.mrb[0].mxu0
        %702 = vdwg.mxu0
        %v703 = vsel %vm193, %v700, -inf
        %704 = vmax.xlane.f32.xlu0 %v703
        %v705 = vpop.xlane.xlu0 %704
        %v706 = vsub.f32 %v700, %v705
        %v707 = vmul.f32 %v706, 1.442695
        %v708 = vpow.pop %v707
        %v710 = vsel %vm193, %v708, 0
        %712 = vmatprep.subr.mxu0 0.0
        %713 = vmatpush1.msra.mxu0 %v156
        %714 = vmatprep.subr.mxu0 0.0
        %715 = vmatpush1.msra.mxu0 %v157
        %716 = vmatprep.subr.mxu0 0.0
        %717 = vmatpush1.msra.mxu0 %v158
        %718 = vmatprep.subr.mxu0 0.0
        %719 = vmatpush1.msra.mxu0 %v159
        %720 = vmatprep.subr.mxu0 0.0
        %721 = vmatpush1.msra.mxu0 0.0
        %722 = vmatprep.subr.mxu0 0.0
        %723 = vmatpush1.msra.mxu0 0.0
        %724 = vmatprep.subr.mxu0 0.0
        %725 = vmatpush1.msra.mxu0 0.0
        %726 = vmatprep.subr.mxu0 0.0
        %727 = vmatpush1.msra.mxu0 0.0
        %728 = vmatprep.subr.mxu0 0.0
        %729 = vmatpush1.msra.mxu0 0.0
        %730 = vmatprep.subr.mxu0 0.0
        %731 = vmatpush1.msra.mxu0 0.0
        %732 = vmatprep.subr.mxu0 0.0
        %733 = vmatpush1.msra.mxu0 0.0
        %734 = vmatprep.subr.mxu0 0.0
        %735 = vmatpush1.msra.mxu0 0.0
        %736 = vmatprep.subr.mxu0 0.0
        %737 = vmatpush1.msra.mxu0 0.0
        %738 = vmatprep.subr.mxu0 0.0
        %739 = vmatpush1.msra.mxu0 0.0
        %740 = vmatprep.subr.mxu0 0.0
        %741 = vmatpush1.msra.mxu0 0.0
        %742 = vmatprep.subr.mxu0 0.0
        %743 = vmatpush1.msra.mxu0 0.0
        %744 = vmatprep.subr.mxu0 0.0
        %745 = vmatpush1.msra.mxu0 0.0
        %746 = vmatprep.subr.mxu0 0.0
        %747 = vmatpush1.msra.mxu0 0.0
        %748 = vmatprep.subr.mxu0 0.0
        %749 = vmatpush1.msra.mxu0 0.0
        %750 = vmatprep.subr.mxu0 0.0
        %751 = vmatpush1.msra.mxu0 0.0
        %752 = vmatprep.subr.mxu0 0.0
        %753 = vmatpush1.msra.mxu0 0.0
        %754 = vmatprep.subr.mxu0 0.0
        %755 = vmatpush1.msra.mxu0 0.0
        %756 = vmatprep.subr.mxu0 0.0
        %757 = vmatpush1.msra.mxu0 0.0
        %758 = vmatprep.subr.mxu0 0.0
        %759 = vmatpush1.msra.mxu0 0.0
        %760 = vmatprep.subr.mxu0 0.0
        %761 = vmatpush1.msra.mxu0 0.0
        %762 = vmatprep.subr.mxu0 0.0
        %763 = vmatpush1.msra.mxu0 0.0
        %764 = vmatprep.subr.mxu0 0.0
        %765 = vmatpush1.msra.mxu0 0.0
        %766 = vmatprep.subr.mxu0 0.0
        %767 = vmatpush1.msra.mxu0 0.0
        %768 = vmatprep.subr.mxu0 0.0
        %769 = vmatpush1.msra.mxu0 0.0
        %770 = vmatprep.subr.mxu0 0.0
        %771 = vmatpush1.msra.mxu0 0.0
        %772 = vmatprep.subr.mxu0 0.0
        %773 = vmatpush1.msra.mxu0 0.0
        %774 = vmatprep.subr.mxu0 0.0
        %775 = vmatpush1.msra.mxu0 0.0
        %776 = vmatprep.mubr.f32.mxu0 0.0
        %777 = vmatmul.mubr.f32.gmra.mrb[0].mxu0 %v710
        %v778 = vpop.f32.mrb[0].mxu0
        %v779 = vadd.f32 0.0, %v778
        %v780 = vpop.f32.mrb[0].mxu0
        %781 = vdwg.mxu0
        %v782 = vrcp.pop %v779
        %v783 = vmul.f32 %v708, %v782
        %788 = vrot.lane.b32.xlu0 %v156, 64
        %v789 = vpop.permute.xlu0 %788
        %790 = vrot.lane.b32.xlu0 %v157, 64
        %v791 = vpop.permute.xlu0 %790
        %792 = vrot.lane.b32.xlu0 %v158, 64
        %v793 = vpop.permute.xlu0 %792
        %794 = vrot.lane.b32.xlu0 %v159, 64
        %v795 = vpop.permute.xlu0 %794
        %v800 = vmul.f32 %v534, %v789
        %v801 = vmul.f32 %v534, %v791
        %v802 = vmul.f32 %v534, %v793
        %v803 = vmul.f32 %v534, %v795
        %808 = vrot.lane.b32.xlu0 %v800, 64
        %v809 = vpop.permute.xlu0 %808
        %810 = vrot.lane.b32.xlu0 %v801, 64
        %v811 = vpop.permute.xlu0 %810
        %812 = vrot.lane.b32.xlu0 %v802, 64
        %v813 = vpop.permute.xlu0 %812
        %814 = vrot.lane.b32.xlu0 %v803, 64
        %v815 = vpop.permute.xlu0 %814
        %v821 = vsel %vm193, %v783, 0
        %823 = vmatprep.subr.mxu0 0.0
        %824 = vmatpush1.msra.mxu0 %v809
        %825 = vmatprep.subr.mxu0 0.0
        %826 = vmatpush1.msra.mxu0 %v811
        %827 = vmatprep.subr.mxu0 0.0
        %828 = vmatpush1.msra.mxu0 %v813
        %829 = vmatprep.subr.mxu0 0.0
        %830 = vmatpush1.msra.mxu0 %v815
        %831 = vmatprep.subr.mxu0 0.0
        %832 = vmatpush1.msra.mxu0 0.0
        %833 = vmatprep.subr.mxu0 0.0
        %834 = vmatpush1.msra.mxu0 0.0
        %835 = vmatprep.subr.mxu0 0.0
        %836 = vmatpush1.msra.mxu0 0.0
        %837 = vmatprep.subr.mxu0 0.0
        %838 = vmatpush1.msra.mxu0 0.0
        %839 = vmatprep.subr.mxu0 0.0
        %840 = vmatpush1.msra.mxu0 0.0
        %841 = vmatprep.subr.mxu0 0.0
        %842 = vmatpush1.msra.mxu0 0.0
        %843 = vmatprep.subr.mxu0 0.0
        %844 = vmatpush1.msra.mxu0 0.0
        %845 = vmatprep.subr.mxu0 0.0
        %846 = vmatpush1.msra.mxu0 0.0
        %847 = vmatprep.subr.mxu0 0.0
        %848 = vmatpush1.msra.mxu0 0.0
        %849 = vmatprep.subr.mxu0 0.0
        %850 = vmatpush1.msra.mxu0 0.0
        %851 = vmatprep.subr.mxu0 0.0
        %852 = vmatpush1.msra.mxu0 0.0
        %853 = vmatprep.subr.mxu0 0.0
        %854 = vmatpush1.msra.mxu0 0.0
        %855 = vmatprep.subr.mxu0 0.0
        %856 = vmatpush1.msra.mxu0 0.0
        %857 = vmatprep.subr.mxu0 0.0
        %858 = vmatpush1.msra.mxu0 0.0
        %859 = vmatprep.subr.mxu0 0.0
        %860 = vmatpush1.msra.mxu0 0.0
        %861 = vmatprep.subr.mxu0 0.0
        %862 = vmatpush1.msra.mxu0 0.0
        %863 = vmatprep.subr.mxu0 0.0
        %864 = vmatpush1.msra.mxu0 0.0
        %865 = vmatprep.subr.mxu0 0.0
        %866 = vmatpush1.msra.mxu0 0.0
        %867 = vmatprep.subr.mxu0 0.0
        %868 = vmatpush1.msra.mxu0 0.0
        %869 = vmatprep.subr.mxu0 0.0
        %870 = vmatpush1.msra.mxu0 0.0
        %871 = vmatprep.subr.mxu0 0.0
        %872 = vmatpush1.msra.mxu0 0.0
        %873 = vmatprep.subr.mxu0 0.0
        %874 = vmatpush1.msra.mxu0 0.0
        %875 = vmatprep.subr.mxu0 0.0
        %876 = vmatpush1.msra.mxu0 0.0
        %877 = vmatprep.subr.mxu0 0.0
        %878 = vmatpush1.msra.mxu0 0.0
        %879 = vmatprep.subr.mxu0 0.0
        %880 = vmatpush1.msra.mxu0 0.0
        %881 = vmatprep.subr.mxu0 0.0
        %882 = vmatpush1.msra.mxu0 0.0
        %883 = vmatprep.subr.mxu0 0.0
        %884 = vmatpush1.msra.mxu0 0.0
        %885 = vmatprep.subr.mxu0 0.0
        %886 = vmatpush1.msra.mxu0 0.0
        %887 = vmatprep.mubr.f32.mxu0 0.0
        %888 = vmatmul.mubr.f32.gmra.mrb[0].mxu0 %v821
        %v889 = vpop.f32.mrb[0].mxu0
        %v890 = vadd.f32 0.0, %v889
        %v891 = vpop.f32.mrb[0].mxu0
        %892 = vdwg.mxu0
        %v893 = vld [vmem:[#allocation3 + $0x100] sm:$0xff]
        %v894 = vld [vmem:[#allocation3 + $0x108] sm:$0xff]
        %v895 = vld [vmem:[#allocation3 + $0x110] sm:$0xff]
        %v896 = vld [vmem:[#allocation3 + $0x118] sm:$0xff]
        %v898 = vsel %vm193, %v890, 0
        %900 = vmatprep.subr.mxu0 0.0
        %901 = vmatpush1.msra.mxu0 %v893
        %902 = vmatprep.subr.mxu0 0.0
        %903 = vmatpush1.msra.mxu0 %v894
        %904 = vmatprep.subr.mxu0 0.0
        %905 = vmatpush1.msra.mxu0 %v895
        %906 = vmatprep.subr.mxu0 0.0
        %907 = vmatpush1.msra.mxu0 %v896
        %908 = vmatprep.subr.mxu0 0.0
        %909 = vmatpush1.msra.mxu0 0.0
        %910 = vmatprep.subr.mxu0 0.0
        %911 = vmatpush1.msra.mxu0 0.0
        %912 = vmatprep.subr.mxu0 0.0
        %913 = vmatpush1.msra.mxu0 0.0
        %914 = vmatprep.subr.mxu0 0.0
        %915 = vmatpush1.msra.mxu0 0.0
        %916 = vmatprep.subr.mxu0 0.0
        %917 = vmatpush1.msra.mxu0 0.0
        %918 = vmatprep.subr.mxu0 0.0
        %919 = vmatpush1.msra.mxu0 0.0
        %920 = vmatprep.subr.mxu0 0.0
        %921 = vmatpush1.msra.mxu0 0.0
        %922 = vmatprep.subr.mxu0 0.0
        %923 = vmatpush1.msra.mxu0 0.0
        %924 = vmatprep.subr.mxu0 0.0
        %925 = vmatpush1.msra.mxu0 0.0
        %926 = vmatprep.subr.mxu0 0.0
        %927 = vmatpush1.msra.mxu0 0.0
        %928 = vmatprep.subr.mxu0 0.0
        %929 = vmatpush1.msra.mxu0 0.0
        %930 = vmatprep.subr.mxu0 0.0
        %931 = vmatpush1.msra.mxu0 0.0
        %932 = vmatprep.subr.mxu0 0.0
        %933 = vmatpush1.msra.mxu0 0.0
        %934 = vmatprep.subr.mxu0 0.0
        %935 = vmatpush1.msra.mxu0 0.0
        %936 = vmatprep.subr.mxu0 0.0
        %937 = vmatpush1.msra.mxu0 0.0
        %938 = vmatprep.subr.mxu0 0.0
        %939 = vmatpush1.msra.mxu0 0.0
        %940 = vmatprep.subr.mxu0 0.0
        %941 = vmatpush1.msra.mxu0 0.0
        %942 = vmatprep.subr.mxu0 0.0
        %943 = vmatpush1.msra.mxu0 0.0
        %944 = vmatprep.subr.mxu0 0.0
        %945 = vmatpush1.msra.mxu0 0.0
        %946 = vmatprep.subr.mxu0 0.0
        %947 = vmatpush1.msra.mxu0 0.0
        %948 = vmatprep.subr.mxu0 0.0
        %949 = vmatpush1.msra.mxu0 0.0
        %950 = vmatprep.subr.mxu0 0.0
        %951 = vmatpush1.msra.mxu0 0.0
        %952 = vmatprep.subr.mxu0 0.0
        %953 = vmatpush1.msra.mxu0 0.0
        %954 = vmatprep.subr.mxu0 0.0
        %955 = vmatpush1.msra.mxu0 0.0
        %956 = vmatprep.subr.mxu0 0.0
        %957 = vmatpush1.msra.mxu0 0.0
        %958 = vmatprep.subr.mxu0 0.0
        %959 = vmatpush1.msra.mxu0 0.0
        %960 = vmatprep.subr.mxu0 0.0
        %961 = vmatpush1.msra.mxu0 0.0
        %962 = vmatprep.subr.mxu0 0.0
        %963 = vmatpush1.msra.mxu0 0.0
        %964 = vmatprep.mubr.f32.mxu0 0.0
        %965 = vmatmul.mubr.f32.gmra.mrb[0].mxu0 %v898
        %v966 = vpop.f32.mrb[0].mxu0
        %v967 = vadd.f32 0.0, %v966
        %v968 = vpop.f32.mrb[0].mxu0
        %969 = vdwg.mxu0
        %v970 = vadd.f32 %v428, %v967
        %v971 = vld [vmem:[#allocation3 + $0x120] sm:$0x1]
        %v972 = vlaneseq
        %v973 = vshrl.u32 %v972, 7
        %v974 = vsub.s32 0, %v973
        %v975 = vrot.slane %v971, %v974
        %v976 = vadd.f32 %v970, %v975
        %v977 = vld [vmem:[#allocation3 + $0x128] sm:$0x1]
        %v978 = vld [vmem:[#allocation3 + $0x130] sm:$0x1]
        %v979 = vsel %vm193, %v976, 0.0
        %980 = vadd.xlane.f32.xlu0 %v979
        %v981 = vpop.xlane.xlu0 %980
        %v982 = vmul.f32 %v981, %v434
        %v983 = vsub.f32 %v976, %v982
        %v984 = vmul.f32 %v983, %v983
        %v985 = vsel %vm193, %v984, 0.0
        %986 = vadd.xlane.f32.xlu0 %v985
        %v987 = vpop.xlane.xlu0 %986
        %v988 = vmul.f32 %v987, %v434
        %v989 = vadd.f32 %v988, 1e-05
        %v990 = vrsqrt.pop %v989
        %v991 = vmul.f32 %v983, %v990
        %v992 = vlaneseq
        %v993 = vshrl.u32 %v992, 7
        %v994 = vsub.s32 0, %v993
        %v995 = vrot.slane %v977, %v994
        %v996 = vmul.f32 %v991, %v995
        %v997 = vlaneseq
        %v998 = vshrl.u32 %v997, 7
        %v999 = vsub.s32 0, %v998
        %v1000 = vrot.slane %v978, %v999
        %v1001 = vadd.f32 %v996, %v1000
        %v1002 = vld [vmem:[#allocation3 + $0x138] sm:$0xff]
        %v1003 = vld [vmem:[#allocation3 + $0x140] sm:$0xff]
        %v1004 = vld [vmem:[#allocation3 + $0x148] sm:$0xff]
        %v1005 = vld [vmem:[#allocation3 + $0x150] sm:$0xff]
        %v1006 = vld [vmem:[#allocation3 + $0x158] sm:$0x1]
        %v1007 = vlaneseq
        %v1008 = vshrl.u32 %v1007, 7
        %v1009 = vsub.s32 0, %v1008
        %v1010 = vrot.slane %v1006, %v1009
        %v1012 = vsel %vm193, %v1001, 0
        %1014 = vmatprep.subr.mxu0 0.0
        %1015 = vmatpush1.msra.mxu0 %v1002
        %1016 = vmatprep.subr.mxu0 0.0
        %1017 = vmatpush1.msra.mxu0 %v1003
        %1018 = vmatprep.subr.mxu0 0.0
        %1019 = vmatpush1.msra.mxu0 %v1004
        %1020 = vmatprep.subr.mxu0 0.0
        %1021 = vmatpush1.msra.mxu0 %v1005
        %1022 = vmatprep.subr.mxu0 0.0
        %1023 = vmatpush1.msra.mxu0 0.0
        %1024 = vmatprep.subr.mxu0 0.0
        %1025 = vmatpush1.msra.mxu0 0.0
        %1026 = vmatprep.subr.mxu0 0.0
        %1027 = vmatpush1.msra.mxu0 0.0
        %1028 = vmatprep.subr.mxu0 0.0
        %1029 = vmatpush1.msra.mxu0 0.0
        %1030 = vmatprep.subr.mxu0 0.0
        %1031 = vmatpush1.msra.mxu0 0.0
        %1032 = vmatprep.subr.mxu0 0.0
        %1033 = vmatpush1.msra.mxu0 0.0
        %1034 = vmatprep.subr.mxu0 0.0
        %1035 = vmatpush1.msra.mxu0 0.0
        %1036 = vmatprep.subr.mxu0 0.0
        %1037 = vmatpush1.msra.mxu0 0.0
        %1038 = vmatprep.subr.mxu0 0.0
        %1039 = vmatpush1.msra.mxu0 0.0
        %1040 = vmatprep.subr.mxu0 0.0
        %1041 = vmatpush1.msra.mxu0 0.0
        %1042 = vmatprep.subr.mxu0 0.0
        %1043 = vmatpush1.msra.mxu0 0.0
        %1044 = vmatprep.subr.mxu0 0.0
        %1045 = vmatpush1.msra.mxu0 0.0
        %1046 = vmatprep.subr.mxu0 0.0
        %1047 = vmatpush1.msra.mxu0 0.0
        %1048 = vmatprep.subr.mxu0 0.0
        %1049 = vmatpush1.msra.mxu0 0.0
        %1050 = vmatprep.subr.mxu0 0.0
        %1051 = vmatpush1.msra.mxu0 0.0
        %1052 = vmatprep.subr.mxu0 0.0
        %1053 = vmatpush1.msra.mxu0 0.0
        %1054 = vmatprep.subr.mxu0 0.0
        %1055 = vmatpush1.msra.mxu0 0.0
        %1056 = vmatprep.subr.mxu0 0.0
        %1057 = vmatpush1.msra.mxu0 0.0
        %1058 = vmatprep.subr.mxu0 0.0
        %1059 = vmatpush1.msra.mxu0 0.0
        %1060 = vmatprep.subr.mxu0 0.0
        %1061 = vmatpush1.msra.mxu0 0.0
        %1062 = vmatprep.subr.mxu0 0.0
        %1063 = vmatpush1.msra.mxu0 0.0
        %1064 = vmatprep.subr.mxu0 0.0
        %1065 = vmatpush1.msra.mxu0 0.0
        %1066 = vmatprep.subr.mxu0 0.0
        %1067 = vmatpush1.msra.mxu0 0.0
        %1068 = vmatprep.subr.mxu0 0.0
        %1069 = vmatpush1.msra.mxu0 0.0
        %1070 = vmatprep.subr.mxu0 0.0
        %1071 = vmatpush1.msra.mxu0 0.0
        %1072 = vmatprep.subr.mxu0 0.0
        %1073 = vmatpush1.msra.mxu0 0.0
        %1074 = vmatprep.subr.mxu0 0.0
        %1075 = vmatpush1.msra.mxu0 0.0
        %1076 = vmatprep.subr.mxu0 0.0
        %1077 = vmatpush1.msra.mxu0 0.0
        %1078 = vmatprep.mubr.f32.mxu0 0.0
        %1079 = vmatmul.mubr.f32.gmra.mrb[0].mxu0 %v1012
        %v1080 = vpop.f32.mrb[0].mxu0
        %v1081 = vadd.f32 %v1010, %v1080
        %v1082 = vpop.f32.mrb[0].mxu0
        %1083 = vdwg.mxu0
        %v1084 = vmul.f32 %v1081, 0.5
        %v1085 = vmul.f32 %v1081, 0.044715
        %v1086 = vmul.f32 %v1085, %v1081
        %v1087 = vmul.f32 %v1086, %v1081
        %v1088 = vadd.f32 %v1081, %v1087
        %v1089 = vmul.f32 %v1088, 0.7978846
        %v1090 = vtanh.pop %v1089
        %v1091 = vadd.f32 %v1090, 1.0
        %v1092 = vmul.f32 %v1084, %v1091
        %v1093 = vld [vmem:[#allocation3 + $0x160] sm:$0xff]
        %v1094 = vld [vmem:[#allocation3 + $0x168] sm:$0xff]
        %v1095 = vld [vmem:[#allocation3 + $0x170] sm:$0xff]
        %v1096 = vld [vmem:[#allocation3 + $0x178] sm:$0xff]
        %v1097 = vld [vmem:[#allocation3 + $0x180] sm:$0xff]
        %v1098 = vld [vmem:[#allocation3 + $0x188] sm:$0xff]
        %v1099 = vld [vmem:[#allocation3 + $0x190] sm:$0xff]
        %v1100 = vld [vmem:[#allocation3 + $0x198] sm:$0xff]
        %v1102 = vsel %vm325, %v1092, 0
        %1104 = vmatprep.subr.mxu0 0.0
        %1105 = vmatpush1.msra.mxu0 %v1093
        %1106 = vmatprep.subr.mxu0 0.0
        %1107 = vmatpush1.msra.mxu0 %v1094
        %1108 = vmatprep.subr.mxu0 0.0
        %1109 = vmatpush1.msra.mxu0 %v1095
        %1110 = vmatprep.subr.mxu0 0.0
        %1111 = vmatpush1.msra.mxu0 %v1096
        %1112 = vmatprep.subr.mxu0 0.0
        %1113 = vmatpush1.msra.mxu0 %v1097
        %1114 = vmatprep.subr.mxu0 0.0
        %1115 = vmatpush1.msra.mxu0 %v1098
        %1116 = vmatprep.subr.mxu0 0.0
        %1117 = vmatpush1.msra.mxu0 %v1099
        %1118 = vmatprep.subr.mxu0 0.0
        %1119 = vmatpush1.msra.mxu0 %v1100
        %1120 = vmatprep.subr.mxu0 0.0
        %1121 = vmatpush1.msra.mxu0 0.0
        %1122 = vmatprep.subr.mxu0 0.0
        %1123 = vmatpush1.msra.mxu0 0.0
        %1124 = vmatprep.subr.mxu0 0.0
        %1125 = vmatpush1.msra.mxu0 0.0
        %1126 = vmatprep.subr.mxu0 0.0
        %1127 = vmatpush1.msra.mxu0 0.0
        %1128 = vmatprep.subr.mxu0 0.0
        %1129 = vmatpush1.msra.mxu0 0.0
        %1130 = vmatprep.subr.mxu0 0.0
        %1131 = vmatpush1.msra.mxu0 0.0
        %1132 = vmatprep.subr.mxu0 0.0
        %1133 = vmatpush1.msra.mxu0 0.0
        %1134 = vmatprep.subr.mxu0 0.0
        %1135 = vmatpush1.msra.mxu0 0.0
        %1136 = vmatprep.subr.mxu0 0.0
        %1137 = vmatpush1.msra.mxu0 0.0
        %1138 = vmatprep.subr.mxu0 0.0
        %1139 = vmatpush1.msra.mxu0 0.0
        %1140 = vmatprep.subr.mxu0 0.0
        %1141 = vmatpush1.msra.mxu0 0.0
        %1142 = vmatprep.subr.mxu0 0.0
        %1143 = vmatpush1.msra.mxu0 0.0
        %1144 = vmatprep.subr.mxu0 0.0
        %1145 = vmatpush1.msra.mxu0 0.0
        %1146 = vmatprep.subr.mxu0 0.0
        %1147 = vmatpush1.msra.mxu0 0.0
        %1148 = vmatprep.subr.mxu0 0.0
        %1149 = vmatpush1.msra.mxu0 0.0
        %1150 = vmatprep.subr.mxu0 0.0
        %1151 = vmatpush1.msra.mxu0 0.0
        %1152 = vmatprep.subr.mxu0 0.0
        %1153 = vmatpush1.msra.mxu0 0.0
        %1154 = vmatprep.subr.mxu0 0.0
        %1155 = vmatpush1.msra.mxu0 0.0
        %1156 = vmatprep.subr.mxu0 0.0
        %1157 = vmatpush1.msra.mxu0 0.0
        %1158 = vmatprep.subr.mxu0 0.0
        %1159 = vmatpush1.msra.mxu0 0.0
        %1160 = vmatprep.subr.mxu0 0.0
        %1161 = vmatpush1.msra.mxu0 0.0
        %1162 = vmatprep.subr.mxu0 0.0
        %1163 = vmatpush1.msra.mxu0 0.0
        %1164 = vmatprep.subr.mxu0 0.0
        %1165 = vmatpush1.msra.mxu0 0.0
        %1166 = vmatprep.subr.mxu0 0.0
        %1167 = vmatpush1.msra.mxu0 0.0
        %1168 = vmatprep.mubr.f32.mxu0 0.0
        %1169 = vmatmul.mubr.f32.gmra.mrb[0].mxu0 %v1102
        %v1170 = vpop.f32.mrb[0].mxu0
        %v1171 = vadd.f32 0.0, %v1170
        %v1172 = vpop.f32.mrb[0].mxu0
        %1173 = vdwg.mxu0
        %v1174 = vadd.f32 %v976, %v1171
        %v1175 = vld [vmem:[#allocation3 + $0x1a0] sm:$0x1]
        %v1176 = vlaneseq
        %v1177 = vshrl.u32 %v1176, 7
        %v1178 = vsub.s32 0, %v1177
        %v1179 = vrot.slane %v1175, %v1178
        %v1180 = vadd.f32 %v1174, %v1179
        %v1181 = vld [vmem:[#allocation3 + $0x1a8] sm:$0x1]
        %v1182 = vld [vmem:[#allocation3 + $0x1b0] sm:$0x1]
        %v1183 = vsel %vm193, %v1180, 0.0
        %1184 = vadd.xlane.f32.xlu0 %v1183
        %v1185 = vpop.xlane.xlu0 %1184
        %v1186 = vmul.f32 %v1185, %v434
        %v1187 = vsub.f32 %v1180, %v1186
        %v1188 = vmul.f32 %v1187, %v1187
        %v1189 = vsel %vm193, %v1188, 0.0
        %1190 = vadd.xlane.f32.xlu0 %v1189
        %v1191 = vpop.xlane.xlu0 %1190
        %v1192 = vmul.f32 %v1191, %v434
        %v1193 = vadd.f32 %v1192, 1e-05
        %v1194 = vrsqrt.pop %v1193
        %v1195 = vmul.f32 %v1187, %v1194
        %v1196 = vlaneseq
        %v1197 = vshrl.u32 %v1196, 7
        %v1198 = vsub.s32 0, %v1197
        %v1199 = vrot.slane %v1181, %v1198
        %v1200 = vmul.f32 %v1195, %v1199
        %v1201 = vlaneseq
        %v1202 = vshrl.u32 %v1201, 7
        %v1203 = vsub.s32 0, %v1202
        %v1204 = vrot.slane %v1182, %v1203
        %v1205 = vadd.f32 %v1200, %v1204
        %v1206 = vld [vmem:[#allocation3 + $0x1b8] sm:$0xff]
        %v1207 = vld [vmem:[#allocation3 + $0x1c0] sm:$0xff]
        %v1208 = vld [vmem:[#allocation3 + $0x1c8] sm:$0xff]
        %v1209 = vld [vmem:[#allocation3 + $0x1d0] sm:$0xff]
        %v1210 = vld [vmem:[#allocation3 + $0x1d8] sm:$0x1]
        %v1211 = vlaneseq
        %v1212 = vshrl.u32 %v1211, 7
        %v1213 = vsub.s32 0, %v1212
        %v1214 = vrot.slane %v1210, %v1213
        %v1216 = vsel %vm193, %v1205, 0
        %1218 = vmatprep.subr.mxu0 0.0
        %1219 = vmatpush1.msra.mxu0 %v1206
        %1220 = vmatprep.subr.mxu0 0.0
        %1221 = vmatpush1.msra.mxu0 %v1207
        %1222 = vmatprep.subr.mxu0 0.0
        %1223 = vmatpush1.msra.mxu0 %v1208
        %1224 = vmatprep.subr.mxu0 0.0
        %1225 = vmatpush1.msra.mxu0 %v1209
        %1226 = vmatprep.subr.mxu0 0.0
        %1227 = vmatpush1.msra.mxu0 0.0
        %1228 = vmatprep.subr.mxu0 0.0
        %1229 = vmatpush1.msra.mxu0 0.0
        %1230 = vmatprep.subr.mxu0 0.0
        %1231 = vmatpush1.msra.mxu0 0.0
        %1232 = vmatprep.subr.mxu0 0.0
        %1233 = vmatpush1.msra.mxu0 0.0
        %1234 = vmatprep.subr.mxu0 0.0
        %1235 = vmatpush1.msra.mxu0 0.0
        %1236 = vmatprep.subr.mxu0 0.0
        %1237 = vmatpush1.msra.mxu0 0.0
        %1238 = vmatprep.subr.mxu0 0.0
        %1239 = vmatpush1.msra.mxu0 0.0
        %1240 = vmatprep.subr.mxu0 0.0
        %1241 = vmatpush1.msra.mxu0 0.0
        %1242 = vmatprep.subr.mxu0 0.0
        %1243 = vmatpush1.msra.mxu0 0.0
        %1244 = vmatprep.subr.mxu0 0.0
        %1245 = vmatpush1.msra.mxu0 0.0
        %1246 = vmatprep.subr.mxu0 0.0
        %1247 = vmatpush1.msra.mxu0 0.0
        %1248 = vmatprep.subr.mxu0 0.0
        %1249 = vmatpush1.msra.mxu0 0.0
        %1250 = vmatprep.subr.mxu0 0.0
        %1251 = vmatpush1.msra.mxu0 0.0
        %1252 = vmatprep.subr.mxu0 0.0
        %1253 = vmatpush1.msra.mxu0 0.0
        %1254 = vmatprep.subr.mxu0 0.0
        %1255 = vmatpush1.msra.mxu0 0.0
        %1256 = vmatprep.subr.mxu0 0.0
        %1257 = vmatpush1.msra.mxu0 0.0
        %1258 = vmatprep.subr.mxu0 0.0
        %1259 = vmatpush1.msra.mxu0 0.0
        %1260 = vmatprep.subr.mxu0 0.0
        %1261 = vmatpush1.msra.mxu0 0.0
        %1262 = vmatprep.subr.mxu0 0.0
        %1263 = vmatpush1.msra.mxu0 0.0
        %1264 = vmatprep.subr.mxu0 0.0
        %1265 = vmatpush1.msra.mxu0 0.0
        %1266 = vmatprep.subr.mxu0 0.0
        %1267 = vmatpush1.msra.mxu0 0.0
        %1268 = vmatprep.subr.mxu0 0.0
        %1269 = vmatpush1.msra.mxu0 0.0
        %1270 = vmatprep.subr.mxu0 0.0
        %1271 = vmatpush1.msra.mxu0 0.0
        %1272 = vmatprep.subr.mxu0 0.0
        %1273 = vmatpush1.msra.mxu0 0.0
        %1274 = vmatprep.subr.mxu0 0.0
        %1275 = vmatpush1.msra.mxu0 0.0
        %1276 = vmatprep.subr.mxu0 0.0
        %1277 = vmatpush1.msra.mxu0 0.0
        %1278 = vmatprep.subr.mxu0 0.0
        %1279 = vmatpush1.msra.mxu0 0.0
        %1280 = vmatprep.subr.mxu0 0.0
        %1281 = vmatpush1.msra.mxu0 0.0
        %1282 = vmatprep.mubr.f32.mxu0 0.0
        %1283 = vmatmul.mubr.f32.gmra.mrb[0].mxu0 %v1216
        %v1284 = vpop.f32.mrb[0].mxu0
        %v1285 = vadd.f32 %v1214, %v1284
        %v1286 = vpop.f32.mrb[0].mxu0
        %1287 = vdwg.mxu0
        %1289 = vrot.lane.b32.xlu0 %v1285, 96
        %v1290 = vpop.permute.xlu0 %1289
        %1292 = vxpose.xlu0.b32.start [1/16] %v1290, 128
        %1293 = vxpose.xlu0.b32.cont [2/16] 0.0, 128
        %1294 = vxpose.xlu0.b32.cont [3/16] 0.0, 128
        %1295 = vxpose.xlu0.b32.cont [4/16] 0.0, 128
        %1296 = vxpose.xlu0.b32.cont [5/16] 0.0, 128
        %1297 = vxpose.xlu0.b32.cont [6/16] 0.0, 128
        %1298 = vxpose.xlu0.b32.cont [7/16] 0.0, 128
        %1299 = vxpose.xlu0.b32.cont [8/16] 0.0, 128
        %1300 = vxpose.xlu0.b32.cont [9/16] 0.0, 128
        %1301 = vxpose.xlu0.b32.cont [10/16] 0.0, 128
        %1302 = vxpose.xlu0.b32.cont [11/16] 0.0, 128
        %1303 = vxpose.xlu0.b32.cont [12/16] 0.0, 128
        %1304 = vxpose.xlu0.b32.cont [13/16] 0.0, 128
        %1305 = vxpose.xlu0.b32.cont [14/16] 0.0, 128
        %1306 = vxpose.xlu0.b32.cont [15/16] 0.0, 128
        %1307 = vxpose.xlu0.b32.end [16/16] 0.0, 128
        %v1308 = vpop.trf.xlu0
        %v1309 = vpop.trf.xlu0
        %v1310 = vpop.trf.xlu0
        %v1311 = vpop.trf.xlu0
        %v1312 = vpop.trf.xlu0
        %v1313 = vpop.trf.xlu0
        %v1314 = vpop.trf.xlu0
        %v1315 = vpop.trf.xlu0
        %v1316 = vpop.trf.xlu0
        %v1317 = vpop.trf.xlu0
        %v1318 = vpop.trf.xlu0
        %v1319 = vpop.trf.xlu0
        %v1320 = vpop.trf.xlu0
        %v1321 = vpop.trf.xlu0
        %v1322 = vpop.trf.xlu0
        %v1323 = vpop.trf.xlu0
        %1328 = vrot.lane.b32.xlu0 %v1308, 8
        %v1329 = vpop.permute.xlu0 %1328
        %1330 = vrot.lane.b32.xlu0 %v1309, 8
        %v1331 = vpop.permute.xlu0 %1330
        %1332 = vrot.lane.b32.xlu0 %v1310, 8
        %v1333 = vpop.permute.xlu0 %1332
        %1334 = vrot.lane.b32.xlu0 %v1311, 8
        %v1335 = vpop.permute.xlu0 %1334
        %1340 = vrot.lane.b32.xlu0 %v1308, 16
        %v1341 = vpop.permute.xlu0 %1340
        %1342 = vrot.lane.b32.xlu0 %v1309, 16
        %v1343 = vpop.permute.xlu0 %1342
        %1344 = vrot.lane.b32.xlu0 %v1310, 16
        %v1345 = vpop.permute.xlu0 %1344
        %1346 = vrot.lane.b32.xlu0 %v1311, 16
        %v1347 = vpop.permute.xlu0 %1346
        %1352 = vrot.lane.b32.xlu0 %v1308, 24
        %v1353 = vpop.permute.xlu0 %1352
        %1354 = vrot.lane.b32.xlu0 %v1309, 24
        %v1355 = vpop.permute.xlu0 %1354
        %1356 = vrot.lane.b32.xlu0 %v1310, 24
        %v1357 = vpop.permute.xlu0 %1356
        %1358 = vrot.lane.b32.xlu0 %v1311, 24
        %v1359 = vpop.permute.xlu0 %1358
        %v1364 = vsel %vm613, %v1308, %v1329
        %v1365 = vsel %vm613, %v1309, %v1331
        %v1366 = vsel %vm613, %v1310, %v1333
        %v1367 = vsel %vm613, %v1311, %v1335
        %v1368 = vsel %vm190, %v1364, %v1341
        %v1369 = vsel %vm190, %v1365, %v1343
        %v1370 = vsel %vm190, %v1366, %v1345
        %v1371 = vsel %vm190, %v1367, %v1347
        %v1372 = vsel %vm622, %v1368, %v1353
        %v1373 = vsel %vm622, %v1369, %v1355
        %v1374 = vsel %vm622, %v1370, %v1357
        %v1375 = vsel %vm622, %v1371, %v1359
        %v1376 = vmul.f32 %v1372, %v156
        %v1377 = vmul.f32 %v1373, %v157
        %v1378 = vmul.f32 %v1374, %v158
        %v1379 = vmul.f32 %v1375, %v159
        %v1380 = vsel %vm193, %v1285, 0
        %1382 = vmatprep.subr.mxu0 0.0
        %1383 = vmatpush1.msra.mxu0 %v1376
        %1384 = vmatprep.subr.mxu0 0.0
        %1385 = vmatpush1.msra.mxu0 %v1377
        %1386 = vmatprep.subr.mxu0 0.0
        %1387 = vmatpush1.msra.mxu0 %v1378
        %1388 = vmatprep.subr.mxu0 0.0
        %1389 = vmatpush1.msra.mxu0 %v1379
        %1390 = vmatprep.subr.mxu0 0.0
        %1391 = vmatpush1.msra.mxu0 0.0
        %1392 = vmatprep.subr.mxu0 0.0
        %1393 = vmatpush1.msra.mxu0 0.0
        %1394 = vmatprep.subr.mxu0 0.0
        %1395 = vmatpush1.msra.mxu0 0.0
        %1396 = vmatprep.subr.mxu0 0.0
        %1397 = vmatpush1.msra.mxu0 0.0
        %1398 = vmatprep.subr.mxu0 0.0
        %1399 = vmatpush1.msra.mxu0 0.0
        %1400 = vmatprep.subr.mxu0 0.0
        %1401 = vmatpush1.msra.mxu0 0.0
        %1402 = vmatprep.subr.mxu0 0.0
        %1403 = vmatpush1.msra.mxu0 0.0
        %1404 = vmatprep.subr.mxu0 0.0
        %1405 = vmatpush1.msra.mxu0 0.0
        %1406 = vmatprep.subr.mxu0 0.0
        %1407 = vmatpush1.msra.mxu0 0.0
        %1408 = vmatprep.subr.mxu0 0.0
        %1409 = vmatpush1.msra.mxu0 0.0
        %1410 = vmatprep.subr.mxu0 0.0
        %1411 = vmatpush1.msra.mxu0 0.0
        %1412 = vmatprep.subr.mxu0 0.0
        %1413 = vmatpush1.msra.mxu0 0.0
        %1414 = vmatprep.subr.mxu0 0.0
        %1415 = vmatpush1.msra.mxu0 0.0
        %1416 = vmatprep.subr.mxu0 0.0
        %1417 = vmatpush1.msra.mxu0 0.0
        %1418 = vmatprep.subr.mxu0 0.0
        %1419 = vmatpush1.msra.mxu0 0.0
        %1420 = vmatprep.subr.mxu0 0.0
        %1421 = vmatpush1.msra.mxu0 0.0
        %1422 = vmatprep.subr.mxu0 0.0
        %1423 = vmatpush1.msra.mxu0 0.0
        %1424 = vmatprep.subr.mxu0 0.0
        %1425 = vmatpush1.msra.mxu0 0.0
        %1426 = vmatprep.subr.mxu0 0.0
        %1427 = vmatpush1.msra.mxu0 0.0
        %1428 = vmatprep.subr.mxu0 0.0
        %1429 = vmatpush1.msra.mxu0 0.0
        %1430 = vmatprep.subr.mxu0 0.0
        %1431 = vmatpush1.msra.mxu0 0.0
        %1432 = vmatprep.subr.mxu0 0.0
        %1433 = vmatpush1.msra.mxu0 0.0
        %1434 = vmatprep.subr.mxu0 0.0
        %1435 = vmatpush1.msra.mxu0 0.0
        %1436 = vmatprep.subr.mxu0 0.0
        %1437 = vmatpush1.msra.mxu0 0.0
        %1438 = vmatprep.subr.mxu0 0.0
        %1439 = vmatpush1.msra.mxu0 0.0
        %1440 = vmatprep.subr.mxu0 0.0
        %1441 = vmatpush1.msra.mxu0 0.0
        %1442 = vmatprep.subr.mxu0 0.0
        %1443 = vmatpush1.msra.mxu0 0.0
        %1444 = vmatprep.subr.mxu0 0.0
        %1445 = vmatpush1.msra.mxu0 0.0
        %1446 = vmatprep.mubr.f32.mxu0 0.0
        %1447 = vmatmul.mubr.f32.gmra.mrb[0].mxu0 %v1380
        %v1448 = vpop.f32.mrb[0].mxu0
        %v1449 = vadd.f32 0.0, %v1448
        %v1450 = vpop.f32.mrb[0].mxu0
        %1451 = vdwg.mxu0
        %v1452 = vsel %vm193, %v1449, -inf
        %1453 = vmax.xlane.f32.xlu0 %v1452
        %v1454 = vpop.xlane.xlu0 %1453
        %v1455 = vsub.f32 %v1449, %v1454
        %v1456 = vmul.f32 %v1455, 1.442695
        %v1457 = vpow.pop %v1456
        %v1459 = vsel %vm193, %v1457, 0
        %1461 = vmatprep.subr.mxu0 0.0
        %1462 = vmatpush1.msra.mxu0 %v156
        %1463 = vmatprep.subr.mxu0 0.0
        %1464 = vmatpush1.msra.mxu0 %v157
        %1465 = vmatprep.subr.mxu0 0.0
        %1466 = vmatpush1.msra.mxu0 %v158
        %1467 = vmatprep.subr.mxu0 0.0
        %1468 = vmatpush1.msra.mxu0 %v159
        %1469 = vmatprep.subr.mxu0 0.0
        %1470 = vmatpush1.msra.mxu0 0.0
        %1471 = vmatprep.subr.mxu0 0.0
        %1472 = vmatpush1.msra.mxu0 0.0
        %1473 = vmatprep.subr.mxu0 0.0
        %1474 = vmatpush1.msra.mxu0 0.0
        %1475 = vmatprep.subr.mxu0 0.0
        %1476 = vmatpush1.msra.mxu0 0.0
        %1477 = vmatprep.subr.mxu0 0.0
        %1478 = vmatpush1.msra.mxu0 0.0
        %1479 = vmatprep.subr.mxu0 0.0
        %1480 = vmatpush1.msra.mxu0 0.0
        %1481 = vmatprep.subr.mxu0 0.0
        %1482 = vmatpush1.msra.mxu0 0.0
        %1483 = vmatprep.subr.mxu0 0.0
        %1484 = vmatpush1.msra.mxu0 0.0
        %1485 = vmatprep.subr.mxu0 0.0
        %1486 = vmatpush1.msra.mxu0 0.0
        %1487 = vmatprep.subr.mxu0 0.0
        %1488 = vmatpush1.msra.mxu0 0.0
        %1489 = vmatprep.subr.mxu0 0.0
        %1490 = vmatpush1.msra.mxu0 0.0
        %1491 = vmatprep.subr.mxu0 0.0
        %1492 = vmatpush1.msra.mxu0 0.0
        %1493 = vmatprep.subr.mxu0 0.0
        %1494 = vmatpush1.msra.mxu0 0.0
        %1495 = vmatprep.subr.mxu0 0.0
        %1496 = vmatpush1.msra.mxu0 0.0
        %1497 = vmatprep.subr.mxu0 0.0
        %1498 = vmatpush1.msra.mxu0 0.0
        %1499 = vmatprep.subr.mxu0 0.0
        %1500 = vmatpush1.msra.mxu0 0.0
        %1501 = vmatprep.subr.mxu0 0.0
        %1502 = vmatpush1.msra.mxu0 0.0
        %1503 = vmatprep.subr.mxu0 0.0
        %1504 = vmatpush1.msra.mxu0 0.0
        %1505 = vmatprep.subr.mxu0 0.0
        %1506 = vmatpush1.msra.mxu0 0.0
        %1507 = vmatprep.subr.mxu0 0.0
        %1508 = vmatpush1.msra.mxu0 0.0
        %1509 = vmatprep.subr.mxu0 0.0
        %1510 = vmatpush1.msra.mxu0 0.0
        %1511 = vmatprep.subr.mxu0 0.0
        %1512 = vmatpush1.msra.mxu0 0.0
        %1513 = vmatprep.subr.mxu0 0.0
        %1514 = vmatpush1.msra.mxu0 0.0
        %1515 = vmatprep.subr.mxu0 0.0
        %1516 = vmatpush1.msra.mxu0 0.0
        %1517 = vmatprep.subr.mxu0 0.0
        %1518 = vmatpush1.msra.mxu0 0.0
        %1519 = vmatprep.subr.mxu0 0.0
        %1520 = vmatpush1.msra.mxu0 0.0
        %1521 = vmatprep.subr.mxu0 0.0
        %1522 = vmatpush1.msra.mxu0 0.0
        %1523 = vmatprep.subr.mxu0 0.0
        %1524 = vmatpush1.msra.mxu0 0.0
        %1525 = vmatprep.mubr.f32.mxu0 0.0
        %1526 = vmatmul.mubr.f32.gmra.mrb[0].mxu0 %v1459
        %v1527 = vpop.f32.mrb[0].mxu0
        %v1528 = vadd.f32 0.0, %v1527
        %v1529 = vpop.f32.mrb[0].mxu0
        %1530 = vdwg.mxu0
        %v1531 = vrcp.pop %v1528
        %v1532 = vmul.f32 %v1457, %v1531
        %v1533 = vmul.f32 %v1285, %v789
        %v1534 = vmul.f32 %v1285, %v791
        %v1535 = vmul.f32 %v1285, %v793
        %v1536 = vmul.f32 %v1285, %v795
        %1541 = vrot.lane.b32.xlu0 %v1533, 64
        %v1542 = vpop.permute.xlu0 %1541
        %1543 = vrot.lane.b32.xlu0 %v1534, 64
        %v1544 = vpop.permute.xlu0 %1543
        %1545 = vrot.lane.b32.xlu0 %v1535, 64
        %v1546 = vpop.permute.xlu0 %1545
        %1547 = vrot.lane.b32.xlu0 %v1536, 64
        %v1548 = vpop.permute.xlu0 %1547
        %v1554 = vsel %vm193, %v1532, 0
        %1556 = vmatprep.subr.mxu0 0.0
        %1557 = vmatpush1.msra.mxu0 %v1542
        %1558 = vmatprep.subr.mxu0 0.0
        %1559 = vmatpush1.msra.mxu0 %v1544
        %1560 = vmatprep.subr.mxu0 0.0
        %1561 = vmatpush1.msra.mxu0 %v1546
        %1562 = vmatprep.subr.mxu0 0.0
        %1563 = vmatpush1.msra.mxu0 %v1548
        %1564 = vmatprep.subr.mxu0 0.0
        %1565 = vmatpush1.msra.mxu0 0.0
        %1566 = vmatprep.subr.mxu0 0.0
        %1567 = vmatpush1.msra.mxu0 0.0
        %1568 = vmatprep.subr.mxu0 0.0
        %1569 = vmatpush1.msra.mxu0 0.0
        %1570 = vmatprep.subr.mxu0 0.0
        %1571 = vmatpush1.msra.mxu0 0.0
        %1572 = vmatprep.subr.mxu0 0.0
        %1573 = vmatpush1.msra.mxu0 0.0
        %1574 = vmatprep.subr.mxu0 0.0
        %1575 = vmatpush1.msra.mxu0 0.0
        %1576 = vmatprep.subr.mxu0 0.0
        %1577 = vmatpush1.msra.mxu0 0.0
        %1578 = vmatprep.subr.mxu0 0.0
        %1579 = vmatpush1.msra.mxu0 0.0
        %1580 = vmatprep.subr.mxu0 0.0
        %1581 = vmatpush1.msra.mxu0 0.0
        %1582 = vmatprep.subr.mxu0 0.0
        %1583 = vmatpush1.msra.mxu0 0.0
        %1584 = vmatprep.subr.mxu0 0.0
        %1585 = vmatpush1.msra.mxu0 0.0
        %1586 = vmatprep.subr.mxu0 0.0
        %1587 = vmatpush1.msra.mxu0 0.0
        %1588 = vmatprep.subr.mxu0 0.0
        %1589 = vmatpush1.msra.mxu0 0.0
        %1590 = vmatprep.subr.mxu0 0.0
        %1591 = vmatpush1.msra.mxu0 0.0
        %1592 = vmatprep.subr.mxu0 0.0
        %1593 = vmatpush1.msra.mxu0 0.0
        %1594 = vmatprep.subr.mxu0 0.0
        %1595 = vmatpush1.msra.mxu0 0.0
        %1596 = vmatprep.subr.mxu0 0.0
        %1597 = vmatpush1.msra.mxu0 0.0
        %1598 = vmatprep.subr.mxu0 0.0
        %1599 = vmatpush1.msra.mxu0 0.0
        %1600 = vmatprep.subr.mxu0 0.0
        %1601 = vmatpush1.msra.mxu0 0.0
        %1602 = vmatprep.subr.mxu0 0.0
        %1603 = vmatpush1.msra.mxu0 0.0
        %1604 = vmatprep.subr.mxu0 0.0
        %1605 = vmatpush1.msra.mxu0 0.0
        %1606 = vmatprep.subr.mxu0 0.0
        %1607 = vmatpush1.msra.mxu0 0.0
        %1608 = vmatprep.subr.mxu0 0.0
        %1609 = vmatpush1.msra.mxu0 0.0
        %1610 = vmatprep.subr.mxu0 0.0
        %1611 = vmatpush1.msra.mxu0 0.0
        %1612 = vmatprep.subr.mxu0 0.0
        %1613 = vmatpush1.msra.mxu0 0.0
        %1614 = vmatprep.subr.mxu0 0.0
        %1615 = vmatpush1.msra.mxu0 0.0
        %1616 = vmatprep.subr.mxu0 0.0
        %1617 = vmatpush1.msra.mxu0 0.0
        %1618 = vmatprep.subr.mxu0 0.0
        %1619 = vmatpush1.msra.mxu0 0.0
        %1620 = vmatprep.mubr.f32.mxu0 0.0
        %1621 = vmatmul.mubr.f32.gmra.mrb[0].mxu0 %v1554
        %v1622 = vpop.f32.mrb[0].mxu0
        %v1623 = vadd.f32 0.0, %v1622
        %v1624 = vpop.f32.mrb[0].mxu0
        %1625 = vdwg.mxu0
        %v1626 = vld [vmem:[#allocation3 + $0x1e0] sm:$0xff]
        %v1627 = vld [vmem:[#allocation3 + $0x1e8] sm:$0xff]
        %v1628 = vld [vmem:[#allocation3 + $0x1f0] sm:$0xff]
        %v1629 = vld [vmem:[#allocation3 + $0x1f8] sm:$0xff]
        %v1631 = vsel %vm193, %v1623, 0
        %1633 = vmatprep.subr.mxu0 0.0
        %1634 = vmatpush1.msra.mxu0 %v1626
        %1635 = vmatprep.subr.mxu0 0.0
        %1636 = vmatpush1.msra.mxu0 %v1627
        %1637 = vmatprep.subr.mxu0 0.0
        %1638 = vmatpush1.msra.mxu0 %v1628
        %1639 = vmatprep.subr.mxu0 0.0
        %1640 = vmatpush1.msra.mxu0 %v1629
        %1641 = vmatprep.subr.mxu0 0.0
        %1642 = vmatpush1.msra.mxu0 0.0
        %1643 = vmatprep.subr.mxu0 0.0
        %1644 = vmatpush1.msra.mxu0 0.0
        %1645 = vmatprep.subr.mxu0 0.0
        %1646 = vmatpush1.msra.mxu0 0.0
        %1647 = vmatprep.subr.mxu0 0.0
        %1648 = vmatpush1.msra.mxu0 0.0
        %1649 = vmatprep.subr.mxu0 0.0
        %1650 = vmatpush1.msra.mxu0 0.0
        %1651 = vmatprep.subr.mxu0 0.0
        %1652 = vmatpush1.msra.mxu0 0.0
        %1653 = vmatprep.subr.mxu0 0.0
        %1654 = vmatpush1.msra.mxu0 0.0
        %1655 = vmatprep.subr.mxu0 0.0
        %1656 = vmatpush1.msra.mxu0 0.0
        %1657 = vmatprep.subr.mxu0 0.0
        %1658 = vmatpush1.msra.mxu0 0.0
        %1659 = vmatprep.subr.mxu0 0.0
        %1660 = vmatpush1.msra.mxu0 0.0
        %1661 = vmatprep.subr.mxu0 0.0
        %1662 = vmatpush1.msra.mxu0 0.0
        %1663 = vmatprep.subr.mxu0 0.0
        %1664 = vmatpush1.msra.mxu0 0.0
        %1665 = vmatprep.subr.mxu0 0.0
        %1666 = vmatpush1.msra.mxu0 0.0
        %1667 = vmatprep.subr.mxu0 0.0
        %1668 = vmatpush1.msra.mxu0 0.0
        %1669 = vmatprep.subr.mxu0 0.0
        %1670 = vmatpush1.msra.mxu0 0.0
        %1671 = vmatprep.subr.mxu0 0.0
        %1672 = vmatpush1.msra.mxu0 0.0
        %1673 = vmatprep.subr.mxu0 0.0
        %1674 = vmatpush1.msra.mxu0 0.0
        %1675 = vmatprep.subr.mxu0 0.0
        %1676 = vmatpush1.msra.mxu0 0.0
        %1677 = vmatprep.subr.mxu0 0.0
        %1678 = vmatpush1.msra.mxu0 0.0
        %1679 = vmatprep.subr.mxu0 0.0
        %1680 = vmatpush1.msra.mxu0 0.0
        %1681 = vmatprep.subr.mxu0 0.0
        %1682 = vmatpush1.msra.mxu0 0.0
        %1683 = vmatprep.subr.mxu0 0.0
        %1684 = vmatpush1.msra.mxu0 0.0
        %1685 = vmatprep.subr.mxu0 0.0
        %1686 = vmatpush1.msra.mxu0 0.0
        %1687 = vmatprep.subr.mxu0 0.0
        %1688 = vmatpush1.msra.mxu0 0.0
        %1689 = vmatprep.subr.mxu0 0.0
        %1690 = vmatpush1.msra.mxu0 0.0
        %1691 = vmatprep.subr.mxu0 0.0
        %1692 = vmatpush1.msra.mxu0 0.0
        %1693 = vmatprep.subr.mxu0 0.0
        %1694 = vmatpush1.msra.mxu0 0.0
        %1695 = vmatprep.subr.mxu0 0.0
        %1696 = vmatpush1.msra.mxu0 0.0
        %1697 = vmatprep.mubr.f32.mxu0 0.0
        %1698 = vmatmul.mubr.f32.gmra.mrb[0].mxu0 %v1631
        %v1699 = vpop.f32.mrb[0].mxu0
        %v1700 = vadd.f32 0.0, %v1699
        %v1701 = vpop.f32.mrb[0].mxu0
        %1702 = vdwg.mxu0
        %v1703 = vadd.f32 %v1180, %v1700
        %v1704 = vld [vmem:[#allocation3 + $0x200] sm:$0x1]
        %v1705 = vlaneseq
        %v1706 = vshrl.u32 %v1705, 7
        %v1707 = vsub.s32 0, %v1706
        %v1708 = vrot.slane %v1704, %v1707
        %v1709 = vadd.f32 %v1703, %v1708
        %v1710 = vld [vmem:[#allocation3 + $0x208] sm:$0x1]
        %v1711 = vld [vmem:[#allocation3 + $0x210] sm:$0x1]
        %v1712 = vsel %vm193, %v1709, 0.0
        %1713 = vadd.xlane.f32.xlu0 %v1712
        %v1714 = vpop.xlane.xlu0 %1713
        %v1715 = vmul.f32 %v1714, %v434
        %v1716 = vsub.f32 %v1709, %v1715
        %v1717 = vmul.f32 %v1716, %v1716
        %v1718 = vsel %vm193, %v1717, 0.0
        %1719 = vadd.xlane.f32.xlu0 %v1718
        %v1720 = vpop.xlane.xlu0 %1719
        %v1721 = vmul.f32 %v1720, %v434
        %v1722 = vadd.f32 %v1721, 1e-05
        %v1723 = vrsqrt.pop %v1722
        %v1724 = vmul.f32 %v1716, %v1723
        %v1725 = vlaneseq
        %v1726 = vshrl.u32 %v1725, 7
        %v1727 = vsub.s32 0, %v1726
        %v1728 = vrot.slane %v1710, %v1727
        %v1729 = vmul.f32 %v1724, %v1728
        %v1730 = vlaneseq
        %v1731 = vshrl.u32 %v1730, 7
        %v1732 = vsub.s32 0, %v1731
        %v1733 = vrot.slane %v1711, %v1732
        %v1734 = vadd.f32 %v1729, %v1733
        %v1735 = vld [vmem:[#allocation3 + $0x218] sm:$0xff]
        %v1736 = vld [vmem:[#allocation3 + $0x220] sm:$0xff]
        %v1737 = vld [vmem:[#allocation3 + $0x228] sm:$0xff]
        %v1738 = vld [vmem:[#allocation3 + $0x230] sm:$0xff]
        %v1739 = vld [vmem:[#allocation3 + $0x238] sm:$0x1]
        %v1740 = vlaneseq
        %v1741 = vshrl.u32 %v1740, 7
        %v1742 = vsub.s32 0, %v1741
        %v1743 = vrot.slane %v1739, %v1742
        %v1745 = vsel %vm193, %v1734, 0
        %1747 = vmatprep.subr.mxu0 0.0
        %1748 = vmatpush1.msra.mxu0 %v1735
        %1749 = vmatprep.subr.mxu0 0.0
        %1750 = vmatpush1.msra.mxu0 %v1736
        %1751 = vmatprep.subr.mxu0 0.0
        %1752 = vmatpush1.msra.mxu0 %v1737
        %1753 = vmatprep.subr.mxu0 0.0
        %1754 = vmatpush1.msra.mxu0 %v1738
        %1755 = vmatprep.subr.mxu0 0.0
        %1756 = vmatpush1.msra.mxu0 0.0
        %1757 = vmatprep.subr.mxu0 0.0
        %1758 = vmatpush1.msra.mxu0 0.0
        %1759 = vmatprep.subr.mxu0 0.0
        %1760 = vmatpush1.msra.mxu0 0.0
        %1761 = vmatprep.subr.mxu0 0.0
        %1762 = vmatpush1.msra.mxu0 0.0
        %1763 = vmatprep.subr.mxu0 0.0
        %1764 = vmatpush1.msra.mxu0 0.0
        %1765 = vmatprep.subr.mxu0 0.0
        %1766 = vmatpush1.msra.mxu0 0.0
        %1767 = vmatprep.subr.mxu0 0.0
        %1768 = vmatpush1.msra.mxu0 0.0
        %1769 = vmatprep.subr.mxu0 0.0
        %1770 = vmatpush1.msra.mxu0 0.0
        %1771 = vmatprep.subr.mxu0 0.0
        %1772 = vmatpush1.msra.mxu0 0.0
        %1773 = vmatprep.subr.mxu0 0.0
        %1774 = vmatpush1.msra.mxu0 0.0
        %1775 = vmatprep.subr.mxu0 0.0
        %1776 = vmatpush1.msra.mxu0 0.0
        %1777 = vmatprep.subr.mxu0 0.0
        %1778 = vmatpush1.msra.mxu0 0.0
        %1779 = vmatprep.subr.mxu0 0.0
        %1780 = vmatpush1.msra.mxu0 0.0
        %1781 = vmatprep.subr.mxu0 0.0
        %1782 = vmatpush1.msra.mxu0 0.0
        %1783 = vmatprep.subr.mxu0 0.0
        %1784 = vmatpush1.msra.mxu0 0.0
        %1785 = vmatprep.subr.mxu0 0.0
        %1786 = vmatpush1.msra.mxu0 0.0
        %1787 = vmatprep.subr.mxu0 0.0
        %1788 = vmatpush1.msra.mxu0 0.0
        %1789 = vmatprep.subr.mxu0 0.0
        %1790 = vmatpush1.msra.mxu0 0.0
        %1791 = vmatprep.subr.mxu0 0.0
        %1792 = vmatpush1.msra.mxu0 0.0
        %1793 = vmatprep.subr.mxu0 0.0
        %1794 = vmatpush1.msra.mxu0 0.0
        %1795 = vmatprep.subr.mxu0 0.0
        %1796 = vmatpush1.msra.mxu0 0.0
        %1797 = vmatprep.subr.mxu0 0.0
        %1798 = vmatpush1.msra.mxu0 0.0
        %1799 = vmatprep.subr.mxu0 0.0
        %1800 = vmatpush1.msra.mxu0 0.0
        %1801 = vmatprep.subr.mxu0 0.0
        %1802 = vmatpush1.msra.mxu0 0.0
        %1803 = vmatprep.subr.mxu0 0.0
        %1804 = vmatpush1.msra.mxu0 0.0
        %1805 = vmatprep.subr.mxu0 0.0
        %1806 = vmatpush1.msra.mxu0 0.0
        %1807 = vmatprep.subr.mxu0 0.0
        %1808 = vmatpush1.msra.mxu0 0.0
        %1809 = vmatprep.subr.mxu0 0.0
        %1810 = vmatpush1.msra.mxu0 0.0
        %1811 = vmatprep.mubr.f32.mxu0 0.0
        %1812 = vmatmul.mubr.f32.gmra.mrb[0].mxu0 %v1745
        %v1813 = vpop.f32.mrb[0].mxu0
        %v1814 = vadd.f32 %v1743, %v1813
        %v1815 = vpop.f32.mrb[0].mxu0
        %1816 = vdwg.mxu0
        %v1817 = vmul.f32 %v1814, 0.5
        %v1818 = vmul.f32 %v1814, 0.044715
        %v1819 = vmul.f32 %v1818, %v1814
        %v1820 = vmul.f32 %v1819, %v1814
        %v1821 = vadd.f32 %v1814, %v1820
        %v1822 = vmul.f32 %v1821, 0.7978846
        %v1823 = vtanh.pop %v1822
        %v1824 = vadd.f32 %v1823, 1.0
        %v1825 = vmul.f32 %v1817, %v1824
        %v1826 = vld [vmem:[#allocation3 + $0x240] sm:$0xff]
        %v1827 = vld [vmem:[#allocation3 + $0x248] sm:$0xff]
        %v1828 = vld [vmem:[#allocation3 + $0x250] sm:$0xff]
        %v1829 = vld [vmem:[#allocation3 + $0x258] sm:$0xff]
        %v1830 = vld [vmem:[#allocation3 + $0x260] sm:$0xff]
        %v1831 = vld [vmem:[#allocation3 + $0x268] sm:$0xff]
        %v1832 = vld [vmem:[#allocation3 + $0x270] sm:$0xff]
        %v1833 = vld [vmem:[#allocation3 + $0x278] sm:$0xff]
        %v1835 = vsel %vm325, %v1825, 0
        %1837 = vmatprep.subr.mxu0 0.0
        %1838 = vmatpush1.msra.mxu0 %v1826
        %1839 = vmatprep.subr.mxu0 0.0
        %1840 = vmatpush1.msra.mxu0 %v1827
        %1841 = vmatprep.subr.mxu0 0.0
        %1842 = vmatpush1.msra.mxu0 %v1828
        %1843 = vmatprep.subr.mxu0 0.0
        %1844 = vmatpush1.msra.mxu0 %v1829
        %1845 = vmatprep.subr.mxu0 0.0
        %1846 = vmatpush1.msra.mxu0 %v1830
        %1847 = vmatprep.subr.mxu0 0.0
        %1848 = vmatpush1.msra.mxu0 %v1831
        %1849 = vmatprep.subr.mxu0 0.0
        %1850 = vmatpush1.msra.mxu0 %v1832
        %1851 = vmatprep.subr.mxu0 0.0
        %1852 = vmatpush1.msra.mxu0 %v1833
        %1853 = vmatprep.subr.mxu0 0.0
        %1854 = vmatpush1.msra.mxu0 0.0
        %1855 = vmatprep.subr.mxu0 0.0
        %1856 = vmatpush1.msra.mxu0 0.0
        %1857 = vmatprep.subr.mxu0 0.0
        %1858 = vmatpush1.msra.mxu0 0.0
        %1859 = vmatprep.subr.mxu0 0.0
        %1860 = vmatpush1.msra.mxu0 0.0
        %1861 = vmatprep.subr.mxu0 0.0
        %1862 = vmatpush1.msra.mxu0 0.0
        %1863 = vmatprep.subr.mxu0 0.0
        %1864 = vmatpush1.msra.mxu0 0.0
        %1865 = vmatprep.subr.mxu0 0.0
        %1866 = vmatpush1.msra.mxu0 0.0
        %1867 = vmatprep.subr.mxu0 0.0
        %1868 = vmatpush1.msra.mxu0 0.0
        %1869 = vmatprep.subr.mxu0 0.0
        %1870 = vmatpush1.msra.mxu0 0.0
        %1871 = vmatprep.subr.mxu0 0.0
        %1872 = vmatpush1.msra.mxu0 0.0
        %1873 = vmatprep.subr.mxu0 0.0
        %1874 = vmatpush1.msra.mxu0 0.0
        %1875 = vmatprep.subr.mxu0 0.0
        %1876 = vmatpush1.msra.mxu0 0.0
        %1877 = vmatprep.subr.mxu0 0.0
        %1878 = vmatpush1.msra.mxu0 0.0
        %1879 = vmatprep.subr.mxu0 0.0
        %1880 = vmatpush1.msra.mxu0 0.0
        %1881 = vmatprep.subr.mxu0 0.0
        %1882 = vmatpush1.msra.mxu0 0.0
        %1883 = vmatprep.subr.mxu0 0.0
        %1884 = vmatpush1.msra.mxu0 0.0
        %1885 = vmatprep.subr.mxu0 0.0
        %1886 = vmatpush1.msra.mxu0 0.0
        %1887 = vmatprep.subr.mxu0 0.0
        %1888 = vmatpush1.msra.mxu0 0.0
        %1889 = vmatprep.subr.mxu0 0.0
        %1890 = vmatpush1.msra.mxu0 0.0
        %1891 = vmatprep.subr.mxu0 0.0
        %1892 = vmatpush1.msra.mxu0 0.0
        %1893 = vmatprep.subr.mxu0 0.0
        %1894 = vmatpush1.msra.mxu0 0.0
        %1895 = vmatprep.subr.mxu0 0.0
        %1896 = vmatpush1.msra.mxu0 0.0
        %1897 = vmatprep.subr.mxu0 0.0
        %1898 = vmatpush1.msra.mxu0 0.0
        %1899 = vmatprep.subr.mxu0 0.0
        %1900 = vmatpush1.msra.mxu0 0.0
        %1901 = vmatprep.mubr.f32.mxu0 0.0
        %1902 = vmatmul.mubr.f32.gmra.mrb[0].mxu0 %v1835
        %v1903 = vpop.f32.mrb[0].mxu0
        %v1904 = vadd.f32 0.0, %v1903
        %v1905 = vpop.f32.mrb[0].mxu0
        %1906 = vdwg.mxu0
        %v1907 = vadd.f32 %v1709, %v1904
        %v1908 = vld [vmem:[#allocation3 + $0x280] sm:$0x1]
        %v1909 = vlaneseq
        %v1910 = vshrl.u32 %v1909, 7
        %v1911 = vsub.s32 0, %v1910
        %v1912 = vrot.slane %v1908, %v1911
        %v1913 = vadd.f32 %v1907, %v1912
        %v1914 = vld [vmem:[#allocation3 + $0x288] sm:$0x1]
        %v1915 = vld [vmem:[#allocation3 + $0x290] sm:$0x1]
        %v1916 = vsel %vm193, %v1913, 0.0
        %1917 = vadd.xlane.f32.xlu0 %v1916
        %v1918 = vpop.xlane.xlu0 %1917
        %v1919 = vmul.f32 %v1918, %v434
        %v1920 = vsub.f32 %v1913, %v1919
        %v1921 = vmul.f32 %v1920, %v1920
        %v1922 = vsel %vm193, %v1921, 0.0
        %1923 = vadd.xlane.f32.xlu0 %v1922
        %v1924 = vpop.xlane.xlu0 %1923
        %v1925 = vmul.f32 %v1924, %v434
        %v1926 = vadd.f32 %v1925, 1e-05
        %v1927 = vrsqrt.pop %v1926
        %v1928 = vmul.f32 %v1920, %v1927
        %v1929 = vlaneseq
        %v1930 = vshrl.u32 %v1929, 7
        %v1931 = vsub.s32 0, %v1930
        %v1932 = vrot.slane %v1914, %v1931
        %v1933 = vmul.f32 %v1928, %v1932
        %v1934 = vlaneseq
        %v1935 = vshrl.u32 %v1934, 7
        %v1936 = vsub.s32 0, %v1935
        %v1937 = vrot.slane %v1915, %v1936
        %v1938 = vadd.f32 %v1933, %v1937
        %v1939 = vsel %vm193, %v1938, 0.0
        %v1940 = vrot.slane %v1939, 4
        %v1941 = vadd.f32 %v1939, %v1940
        %v1942 = vrot.slane %v1941, 2
        %v1943 = vadd.f32 %v1941, %v1942
        %v1944 = vrot.slane %v1943, 1
        %v1945 = vadd.f32 %v1943, %v1944
        %v1946 = vrcp.pop 8.0
        %v1947 = vmul.f32 %v1945, %v1946
        %v1948 = vld [vmem:[#allocation3 + $0x298] sm:$0xff]
        %v1949 = vld [vmem:[#allocation3 + $0x2a0] sm:$0xff]
        %v1950 = vld [vmem:[#allocation3 + $0x2a8] sm:$0xff]
        %v1951 = vld [vmem:[#allocation3 + $0x2b0] sm:$0xff]
        %v1952 = vld [vmem:[#allocation3 + $0x2b8] sm:$0x1]
        %v1954 = vsel %vm193, %v1947, 0
        %1956 = vmatprep.subr.mxu0 0.0
        %1957 = vmatpush1.msra.mxu0 %v1948
        %1958 = vmatprep.subr.mxu0 0.0
        %1959 = vmatpush1.msra.mxu0 %v1949
        %1960 = vmatprep.subr.mxu0 0.0
        %1961 = vmatpush1.msra.mxu0 %v1950
        %1962 = vmatprep.subr.mxu0 0.0
        %1963 = vmatpush1.msra.mxu0 %v1951
        %1964 = vmatprep.subr.mxu0 0.0
        %1965 = vmatpush1.msra.mxu0 0.0
        %1966 = vmatprep.subr.mxu0 0.0
        %1967 = vmatpush1.msra.mxu0 0.0
        %1968 = vmatprep.subr.mxu0 0.0
        %1969 = vmatpush1.msra.mxu0 0.0
        %1970 = vmatprep.subr.mxu0 0.0
        %1971 = vmatpush1.msra.mxu0 0.0
        %1972 = vmatprep.subr.mxu0 0.0
        %1973 = vmatpush1.msra.mxu0 0.0
        %1974 = vmatprep.subr.mxu0 0.0
        %1975 = vmatpush1.msra.mxu0 0.0
        %1976 = vmatprep.subr.mxu0 0.0
        %1977 = vmatpush1.msra.mxu0 0.0
        %1978 = vmatprep.subr.mxu0 0.0
        %1979 = vmatpush1.msra.mxu0 0.0
        %1980 = vmatprep.subr.mxu0 0.0
        %1981 = vmatpush1.msra.mxu0 0.0
        %1982 = vmatprep.subr.mxu0 0.0
        %1983 = vmatpush1.msra.mxu0 0.0
        %1984 = vmatprep.subr.mxu0 0.0
        %1985 = vmatpush1.msra.mxu0 0.0
        %1986 = vmatprep.subr.mxu0 0.0
        %1987 = vmatpush1.msra.mxu0 0.0
        %1988 = vmatprep.subr.mxu0 0.0
        %1989 = vmatpush1.msra.mxu0 0.0
        %1990 = vmatprep.subr.mxu0 0.0
        %1991 = vmatpush1.msra.mxu0 0.0
        %1992 = vmatprep.subr.mxu0 0.0
        %1993 = vmatpush1.msra.mxu0 0.0
        %1994 = vmatprep.subr.mxu0 0.0
        %1995 = vmatpush1.msra.mxu0 0.0
        %1996 = vmatprep.subr.mxu0 0.0
        %1997 = vmatpush1.msra.mxu0 0.0
        %1998 = vmatprep.subr.mxu0 0.0
        %1999 = vmatpush1.msra.mxu0 0.0
        %2000 = vmatprep.subr.mxu0 0.0
        %2001 = vmatpush1.msra.mxu0 0.0
        %2002 = vmatprep.subr.mxu0 0.0
        %2003 = vmatpush1.msra.mxu0 0.0
        %2004 = vmatprep.subr.mxu0 0.0
        %2005 = vmatpush1.msra.mxu0 0.0
        %2006 = vmatprep.subr.mxu0 0.0
        %2007 = vmatpush1.msra.mxu0 0.0
        %2008 = vmatprep.subr.mxu0 0.0
        %2009 = vmatpush1.msra.mxu0 0.0
        %2010 = vmatprep.subr.mxu0 0.0
        %2011 = vmatpush1.msra.mxu0 0.0
        %2012 = vmatprep.subr.mxu0 0.0
        %2013 = vmatpush1.msra.mxu0 0.0
        %2014 = vmatprep.subr.mxu0 0.0
        %2015 = vmatpush1.msra.mxu0 0.0
        %2016 = vmatprep.subr.mxu0 0.0
        %2017 = vmatpush1.msra.mxu0 0.0
        %2018 = vmatprep.subr.mxu0 0.0
        %2019 = vmatpush1.msra.mxu0 0.0
        %2020 = vmatprep.mubr.f32.mxu0 0.0
        %2021 = vmatmul.mubr.f32.gmra.mrb[0].mxu0 %v1954
        %v2022 = vpop.f32.mrb[0].mxu0
        %v2023 = vadd.f32 %v1952, %v2022
        %v2024 = vpop.f32.mrb[0].mxu0
        %2025 = vdwg.mxu0
        %v2026 = vmax.f32 %v2023, 0.0
        %v2027 = vld [vmem:[#allocation3 + $0x2c0] sm:$0xff]
        %v2028 = vld [vmem:[#allocation3 + $0x2c8] sm:$0xff]
        %v2029 = vld [vmem:[#allocation3 + $0x2d0] sm:$0xff]
        %v2030 = vld [vmem:[#allocation3 + $0x2d8] sm:$0x1]
        %v2032 = vsel %vm622, %v2026, 0
        %2034 = vmatprep.subr.mxu0 0.0
        %2035 = vmatpush1.msra.mxu0 %v2027
        %2036 = vmatprep.subr.mxu0 0.0
        %2037 = vmatpush1.msra.mxu0 %v2028
        %2038 = vmatprep.subr.mxu0 0.0
        %2039 = vmatpush1.msra.mxu0 %v2029
        %2040 = vmatprep.subr.mxu0 0.0
        %2041 = vmatpush1.msra.mxu0 0.0
        %2042 = vmatprep.subr.mxu0 0.0
        %2043 = vmatpush1.msra.mxu0 0.0
        %2044 = vmatprep.subr.mxu0 0.0
        %2045 = vmatpush1.msra.mxu0 0.0
        %2046 = vmatprep.subr.mxu0 0.0
        %2047 = vmatpush1.msra.mxu0 0.0
        %2048 = vmatprep.subr.mxu0 0.0
        %2049 = vmatpush1.msra.mxu0 0.0
        %2050 = vmatprep.subr.mxu0 0.0
        %2051 = vmatpush1.msra.mxu0 0.0
        %2052 = vmatprep.subr.mxu0 0.0
        %2053 = vmatpush1.msra.mxu0 0.0
        %2054 = vmatprep.subr.mxu0 0.0
        %2055 = vmatpush1.msra.mxu0 0.0
        %2056 = vmatprep.subr.mxu0 0.0
        %2057 = vmatpush1.msra.mxu0 0.0
        %2058 = vmatprep.subr.mxu0 0.0
        %2059 = vmatpush1.msra.mxu0 0.0
        %2060 = vmatprep.subr.mxu0 0.0
        %2061 = vmatpush1.msra.mxu0 0.0
        %2062 = vmatprep.subr.mxu0 0.0
        %2063 = vmatpush1.msra.mxu0 0.0
        %2064 = vmatprep.subr.mxu0 0.0
        %2065 = vmatpush1.msra.mxu0 0.0
        %2066 = vmatprep.subr.mxu0 0.0
        %2067 = vmatpush1.msra.mxu0 0.0
        %2068 = vmatprep.subr.mxu0 0.0
        %2069 = vmatpush1.msra.mxu0 0.0
        %2070 = vmatprep.subr.mxu0 0.0
        %2071 = vmatpush1.msra.mxu0 0.0
        %2072 = vmatprep.subr.mxu0 0.0
        %2073 = vmatpush1.msra.mxu0 0.0
        %2074 = vmatprep.subr.mxu0 0.0
        %2075 = vmatpush1.msra.mxu0 0.0
        %2076 = vmatprep.subr.mxu0 0.0
        %2077 = vmatpush1.msra.mxu0 0.0
        %2078 = vmatprep.subr.mxu0 0.0
        %2079 = vmatpush1.msra.mxu0 0.0
        %2080 = vmatprep.subr.mxu0 0.0
        %2081 = vmatpush1.msra.mxu0 0.0
        %2082 = vmatprep.subr.mxu0 0.0
        %2083 = vmatpush1.msra.mxu0 0.0
        %2084 = vmatprep.subr.mxu0 0.0
        %2085 = vmatpush1.msra.mxu0 0.0
        %2086 = vmatprep.subr.mxu0 0.0
        %2087 = vmatpush1.msra.mxu0 0.0
        %2088 = vmatprep.subr.mxu0 0.0
        %2089 = vmatpush1.msra.mxu0 0.0
        %2090 = vmatprep.subr.mxu0 0.0
        %2091 = vmatpush1.msra.mxu0 0.0
        %2092 = vmatprep.subr.mxu0 0.0
        %2093 = vmatpush1.msra.mxu0 0.0
        %2094 = vmatprep.subr.mxu0 0.0
        %2095 = vmatpush1.msra.mxu0 0.0
        %2096 = vmatprep.subr.mxu0 0.0
        %2097 = vmatpush1.msra.mxu0 0.0
        %2098 = vmatprep.mubr.f32.mxu0 0.0
        %2099 = vmatmul.mubr.f32.gmra.mrb[0].mxu0 %v2032
        %v2100 = vpop.f32.mrb[0].mxu0
        %v2101 = vadd.f32 %v2030, %v2100
        %v2102 = vpop.f32.mrb[0].mxu0
        %2103 = vdwg.mxu0
        %2104 = vst [vmem:[%s150] sm:$0x1] %v2101
        %s2105 = sand.u32 %s72, 1
        %s2106 = scalar_lea.sflag [#allocation5], %s2105
        %s2107 = sand.u32 %s72, 1
        %s2108 = scalar_lea.vmem [#allocation6], %s2107
        // Predicated region
        $region33: #{whisper_classifier_forward.1} parent=27 // pred_check
          %p2109 = pneg %p82
        $region34: #{whisper_classifier_forward.1} parent=27 // pred_check_branch
          %2111 = sbr.rel (%p2109) target = $region36
        $region35: #{whisper_classifier_forward.1} parent=27 // pred_region
          %s2113 = ssub.s32 16, 16
          %2114 = vsyncadd %s2106, %s2113
          %s2115 = smul.addr %s17, 16
          %s2116 = scalar_lea.hbm %s2, %s2115
          %s2118 = sshll.u32 %s2108, 4
          %s2119 = int_to_ptr.vmem [resolvable:$true] %s2118
          %2121 = dma.vmem_to_hbm [thread:$0]  %s2119, 16, %s2116, %s2106
        $region36: #{whisper_classifier_forward.1} parent=27 // pred_fallthru
          _
      $region28: #{whisper_classifier_forward.1} parent=5 // pred_fallthru
        _
      %p2122 = scmp.le.s32.totalorder 2, %s12
      // Predicated region
      $region37: #{whisper_classifier_forward.1} parent=5 // pred_check
        %p2123 = pneg %p2122
      $region38: #{whisper_classifier_forward.1} parent=5 // pred_check_branch
        %2125 = sbr.rel (%p2123) target = $region40
      $region39: #{whisper_classifier_forward.1} parent=5 // pred_region
        %s2126 = ssub.s32 %s12, 2
        // Predicated region
        $region41: #{whisper_classifier_forward.1} parent=39 // pred_check
          %p2127 = pneg %p88
        $region42: #{whisper_classifier_forward.1} parent=39 // pred_check_branch
          %2129 = sbr.rel (%p2127) target = $region44
        $region43: #{whisper_classifier_forward.1} parent=39 // pred_region
          %s2130 = sand.u32 %s73, 1
          %s2131 = scalar_lea.sflag [#allocation5], %s2130
          %s2132 = sand.u32 %s73, 1
          %s2133 = scalar_lea.vmem [#allocation6], %s2132
          %2134 = dma.done %s2131, 16
        $region44: #{whisper_classifier_forward.1} parent=39 // pred_fallthru
          _
      $region40: #{whisper_classifier_forward.1} parent=5 // pred_fallthru
        _
    $region6: #{whisper_classifier_forward.1} parent=1 // loop_footer
      %s16 = sadd.s32 1, %s12
    $region7: #{whisper_classifier_forward.1} parent=1 // loop_footer_branch
      %11 = sbr.rel target = $region3
    $region8: #{whisper_classifier_forward.1} parent=1 // loop_exit
      _
    %2135 = vsyncpa [#allocation4], 1
    %s2136 = scalar_lea.sflag [#allocation4], 1
    %2137 = vsyncpa %s2136, 1
    %2138 = vsyncpa [#allocation5], 1
    %s2139 = scalar_lea.sflag [#allocation5], 1
    %2140 = vsyncpa %s2139, 1

</llo_original>
